<compile_context>
chip_gen: v5e
topology: v5e:2x2
jax: 0.10.0
libtpu: 0.0.40
codegen_flags: <defaults>
</compile_context>

<pallas_src>
import numpy as np
import jax
import jax.numpy as jnp
from jax.experimental import pallas as pl
from jax.experimental.pallas import tpu as pltpu


def _round_up(x, m):
    return (x + m - 1) // m * m


def _make_moco_kernel(K, TK, Kp):
    """Kernel closure over the (static) queue size / tiling so padded K columns
    can be masked without any extra scalar plumbing."""
    masked = (Kp != K)

    def kernel(inv_t_ref, xq_ref, xk_ref, w_ref, b_ref, queue_ref,
               lneg_ref, lpos_ref, nll_ref, rank_ref,
               qbf_ref, lpos_s, l_s, rank_s):
        kt = pl.program_id(1)
        tn = xq_ref.shape[0]
        inv_t = inv_t_ref[0]

        # ---- encoder + normalization: once per batch tile (K tile 0) ----
        @pl.when(kt == 0)
        def _():
            # One fused MXU weight-push serves both encoder_q and encoder_k
            # (params shared at init); inputs arrive already in bf16.
            x2 = jnp.concatenate([xq_ref[...], xk_ref[...]], axis=0)     # (2*tn, Cp)
            h = jnp.tanh(
                jnp.dot(x2, w_ref[...], preferred_element_type=jnp.float32)
                + b_ref[...])
            # F.normalize(x, dim=1) via rsqrt (EUP) + multiply (VPU), all f32.
            inv_nrm = jax.lax.rsqrt(
                jnp.maximum(jnp.sum(h * h, axis=1, keepdims=True), 1e-24))
            h = h * inv_nrm
            q_t = h[:tn, :] * inv_t            # fold 1/T into q (scales l_pos & l_neg)
            k = h[tn:, :]
            l_pos_t = jnp.sum(q_t * k, axis=1, keepdims=True)            # == l_pos / T
            qbf_ref[...] = q_t.astype(qbf_ref.dtype)                      # bf16 for queue MXU
            lpos_s[...] = l_pos_t
            # Fixed logsumexp max m = 1/T: q, k and the queue are all
            # L2-normalized so every logit <= 1/T (assumption of the module;
            # exp(-2/T) ~ 4e-13 stays well inside f32 for T = 0.07).
            l_s[...] = jnp.exp(l_pos_t - inv_t)     # positive's contribution
            rank_s[...] = jnp.zeros_like(rank_s)
            lpos_ref[...] = jnp.broadcast_to(
                l_pos_t, lpos_ref.shape).astype(lpos_ref.dtype)           # lane-dense slab

        # ---- streamed queue tile: l_neg / T (bf16 MXU, f32 accumulation) ----
        s = jnp.dot(qbf_ref[...], queue_ref[...], preferred_element_type=jnp.float32)
        lneg_ref[...] = s.astype(lneg_ref.dtype)

        if masked:  # zero-padded queue columns must not enter the loss / rank
            col = kt * TK + jax.lax.broadcasted_iota(jnp.int32, s.shape, 1)
            s = jnp.where(col < K, s, -jnp.inf)

        # ---- fixed-max logsumexp sum + in-kernel top-k rank accumulation ----
        l_s[...] = l_s[...] + jnp.sum(jnp.exp(s - inv_t), axis=1, keepdims=True)
        rank_s[...] = rank_s[...] + jnp.sum(
            (s > lpos_s[...]).astype(jnp.float32), axis=1, keepdims=True)

        @pl.when(kt == pl.num_programs(1) - 1)
        def _():
            # CrossEntropyLoss with labels == 0: lse - l_pos (both already / T).
            nll = (inv_t + jnp.log(l_s[...])) - lpos_s[...]               # (tn, 1) f32
            nll_ref[...] = jnp.broadcast_to(nll, nll_ref.shape)           # lane-dense slabs
            rank_ref[...] = jnp.broadcast_to(rank_s[...], rank_ref.shape)

    return kernel


def dial_moco_forward(x_q, x_k, w, b, queue, *, T=0.07,
                      topk=(1, 5, 10, 100, 1000),
                      logits_dtype=jnp.bfloat16):
    N, C = x_q.shape
    K = queue.shape[1]
    Cp = _round_up(C, 128)       # dense MXU contraction
    Np = _round_up(N, 8)         # sublane alignment

    # --- K tiling: large tiles; pad K (mask in-kernel) if nothing divides it.
    if K % 2048 == 0:
        TK = 2048
    elif K % 1024 == 0:
        TK = 1024
    elif K % 512 == 0:
        TK = 512
    elif K % 256 == 0:
        TK = 256
    else:
        TK = min(2048, _round_up(K, 256))
    Kp = _round_up(K, TK)

    # --- batch tiling: a single batch tile streams the queue from HBM exactly
    #     once (the dominant stream); otherwise 256-row tiles for the 256-wide MXU.
    if Np <= 512:
        TN = Np
    else:
        TN = 256
        Np = _round_up(N, TN)

    pad_n, pad_c = Np - N, Cp - C

    # Zero padding of the contraction dim / batch / queue columns is exact here
    # (padded queue columns are additionally masked to -inf inside the kernel).
    xq_p = jnp.pad(x_q, ((0, pad_n), (0, pad_c))).astype(jnp.bfloat16)
    xk_p = jnp.pad(x_k, ((0, pad_n), (0, pad_c))).astype(jnp.bfloat16)
    w_p = jnp.pad(w, ((0, pad_c), (0, pad_c))).astype(jnp.bfloat16)
    b_p = jnp.pad(b.reshape(1, -1), ((0, 0), (0, pad_c))).astype(jnp.float32)
    queue_p = jnp.pad(queue, ((0, pad_c), (0, Kp - K))).astype(jnp.bfloat16)
    inv_t = jnp.full((1,), 1.0 / float(T), dtype=jnp.float32)     # SMEM scalar

    grid = (Np // TN, Kp // TK)

    out_it = jnp.dtype(logits_dtype).itemsize
    vmem_est = (
        2 * Cp * TK * 2                      # queue tiles (bf16, double-buffered)
        + 2 * TN * TK * out_it               # l_neg out tiles (double-buffered)
        + 2 * 2 * TN * Cp * 2                # x_q / x_k tiles (bf16)
        + 2 * Cp * Cp * 2                    # weight (bf16)
        + 2 * Cp * 4                         # bias
        + 2 * TN * 128 * (out_it + 4 + 4)    # l_pos / nll / rank slabs
        + TN * Cp * 2 + 3 * TN * 4           # scratch
        + 6 * 2 * TN * Cp * 4)               # encoder epilogue f32 temporaries
    # Safe on every generation (v7x physical VMEM is 64 MiB).
    vmem_limit = int(min(max(2 * vmem_est, 32 * 1024 * 1024), 56 * 1024 * 1024))

    kernel = _make_moco_kernel(K=K, TK=TK, Kp=Kp)

    lneg, lpos_slab, nll_slab, rank_slab = pl.pallas_call(
        kernel,
        grid=grid,
        in_specs=[
            pl.BlockSpec(memory_space=pltpu.SMEM),                # 1/T scalar
            pl.BlockSpec((TN, Cp), lambda i, k: (i, 0)),          # x_q (bf16)
            pl.BlockSpec((TN, Cp), lambda i, k: (i, 0)),          # x_k (bf16)
            pl.BlockSpec((Cp, Cp), lambda i, k: (0, 0)),          # W (bf16)
            pl.BlockSpec((1, Cp), lambda i, k: (0, 0)),           # b
            pl.BlockSpec((Cp, TK), lambda i, k: (0, k)),          # queue (streamed)
        ],
        out_specs=(
            pl.BlockSpec((TN, TK), lambda i, k: (i, k)),          # l_neg / T
            pl.BlockSpec((TN, 128), lambda i, k: (i, 0)),         # l_pos / T slab
            pl.BlockSpec((TN, 128), lambda i, k: (i, 0)),         # per-example CE loss
            pl.BlockSpec((TN, 128), lambda i, k: (i, 0)),         # rank of the positive
        ),
        out_shape=(
            jax.ShapeDtypeStruct((Np, Kp), logits_dtype),
            jax.ShapeDtypeStruct((Np, 128), logits_dtype),
            jax.ShapeDtypeStruct((Np, 128), jnp.float32),
            jax.ShapeDtypeStruct((Np, 128), jnp.float32),
        ),
        scratch_shapes=[
            pltpu.VMEM((TN, Cp), jnp.bfloat16),   # q * (1/T) in bf16
            pltpu.VMEM((TN, 1), jnp.float32),     # l_pos / T
            pltpu.VMEM((TN, 1), jnp.float32),     # running sum of exp(logit - 1/T)
            pltpu.VMEM((TN, 1), jnp.float32),     # running count of logits > l_pos
        ],
        compiler_params=pltpu.CompilerParams(
            dimension_semantics=("parallel", "arbitrary"),
            vmem_limit_bytes=vmem_limit,
        ),
    )(inv_t, xq_p, xk_p, w_p, b_p, queue_p)

    # Logits stay in logits_dtype end-to-end (no f32 N x K round trip). The
    # torch module's (N, 1+K) concatenated layout is inherently lane-misaligned;
    # this concat is the only remaining wrapper-side touch of the N x K array.
    l_pos = lpos_slab[:N, :1]
    l_neg = lneg[:N, :K]
    logits = jnp.concatenate([l_pos, l_neg], axis=1)               # already / T
    loss = jnp.mean(nll_slab[:N, 0])
    labels = jnp.zeros((N,), dtype=jnp.int32)

    # top-k accuracy (mirrors the torch `accuracy` helper with target == 0),
    # from the in-kernel rank -- lazy device scalars, no host sync here.
    rank = rank_slab[:N, 0]
    ncls = 1 + K
    acc = {kk: jnp.mean((rank < kk).astype(jnp.float32)) * 100.0
           for kk in topk if kk <= ncls}

    return {
        'moco_logits': logits,
        'moco_loss': loss,
        'loss': loss,
        'acc': acc,
        'labels': labels,
    }


def _reference(x_q, x_k, w, b, queue, T):
    """Pure-JAX mirror of the kernel arithmetic (bf16 matmuls, f32 elementwise)."""
    n = x_q.shape[0]
    inv_t = 1.0 / T
    x2 = jnp.concatenate([x_q, x_k], axis=0).astype(jnp.bfloat16)
    h = jnp.tanh(jnp.dot(x2, w.astype(jnp.bfloat16),
                         preferred_element_type=jnp.float32) + b[None, :])
    h = h * jax.lax.rsqrt(jnp.maximum(jnp.sum(h * h, axis=1, keepdims=True), 1e-24))
    q, k = h[:n], h[n:]
    q_t = q * inv_t
    l_pos_t = jnp.sum(q_t * k, axis=1, keepdims=True)
    l_neg_t = jnp.dot(q_t.astype(jnp.bfloat16), queue.astype(jnp.bfloat16),
                      preferred_element_type=jnp.float32)
    logits_t = jnp.concatenate([l_pos_t, l_neg_t], axis=1)
    lse = jax.scipy.special.logsumexp(logits_t, axis=1)
    loss = jnp.mean(lse - logits_t[:, 0])
    # the kernel returns logits in bf16; mirror that rounding for comparison
    logits_out = jnp.concatenate(
        [l_pos_t.astype(jnp.bfloat16), l_neg_t.astype(jnp.bfloat16)],
        axis=1).astype(jnp.float32)
    rank = jnp.sum(logits_t[:, 1:] > logits_t[:, :1], axis=1)
    return logits_out, loss, rank


if __name__ == "__main__":
    # batch, hidden_size (config.hidden_size), moco_K, moco_T
    # K deliberately NOT a multiple of the K tile -> exercises pad + in-kernel mask.
    N, C, K, T = 8, 128, 4000, 0.07

    key = jax.random.PRNGKey(0)
    k1, k2, k3, k4, k5 = jax.random.split(key, 5)
    x_q = jax.random.normal(k1, (N, C), jnp.float32)           # query dialog features
    x_k = jax.random.normal(k2, (N, C), jnp.float32)           # key dialog features
    w = jax.random.normal(k3, (C, C), jnp.float32) * 0.05      # encoder pooler weight
    b = jax.random.normal(k4, (C,), jnp.float32) * 0.01        # encoder pooler bias
    queue = jax.random.normal(k5, (C, K), jnp.float32)         # register_buffer('queue')
    queue = queue / jnp.linalg.norm(queue, axis=0, keepdims=True)

    out = dial_moco_forward(x_q, x_k, w, b, queue, T=T)
    jax.block_until_ready(out['moco_logits'])
    jax.block_until_ready(out['moco_loss'])
    for v in out['acc'].values():
        jax.block_until_ready(v)

    ref_logits, ref_loss, ref_rank = _reference(x_q, x_k, w, b, queue, T)
    got_logits = np.asarray(jnp.asarray(out['moco_logits'], dtype=jnp.float32))
    np.testing.assert_allclose(got_logits, np.asarray(ref_logits),
                               rtol=1e-2, atol=1e-2)
    np.testing.assert_allclose(float(out['moco_loss']), float(ref_loss),
                               rtol=1e-2, atol=1e-2)
    assert set(out['acc'].keys()) == {1, 5, 10, 100, 1000}
    assert all(0.0 <= float(v) <= 100.0 for v in out['acc'].values())

    print("KERNEL_OK")
</pallas_src>

<mosaic_0001>
module attributes {stable_mosaic.version = 11 : i64} {
  func.func @kernel(%arg0: i32, %arg1: i32, %arg2: memref<1xf32, #tpu.memory_space<smem>>, %arg3: memref<8x128xbf16, #tpu.memory_space<vmem>>, %arg4: memref<8x128xbf16, #tpu.memory_space<vmem>>, %arg5: memref<128x128xbf16, #tpu.memory_space<vmem>>, %arg6: memref<1x128xf32, #tpu.memory_space<vmem>>, %arg7: memref<128x2048xbf16, #tpu.memory_space<vmem>>, %arg8: memref<8x2048xbf16, #tpu.memory_space<vmem>>, %arg9: memref<8x128xbf16, #tpu.memory_space<vmem>>, %arg10: memref<8x128xf32, #tpu.memory_space<vmem>>, %arg11: memref<8x128xf32, #tpu.memory_space<vmem>>, %arg12: memref<8x128xbf16, #tpu.memory_space<vmem>>, %arg13: memref<8x1xf32, #tpu.memory_space<vmem>>, %arg14: memref<8x1xf32, #tpu.memory_space<vmem>>, %arg15: memref<8x1xf32, #tpu.memory_space<vmem>>) attributes {dimension_semantics = [#tpu.dimension_semantics<parallel>, #tpu.dimension_semantics<arbitrary>], iteration_bounds = array<i64: 1, 2>, scalar_prefetch = 0 : i64, scratch_operands = 4 : i64, tpu.core_type = #tpu.core_type<tc>, window_params = [{transform_indices = @transform_0, window_bounds = array<i64: 1>}, {transform_indices = @transform_1, window_bounds = array<i64: 8, 128>}, {transform_indices = @transform_2, window_bounds = array<i64: 8, 128>}, {pipeline_mode = #tpu.pipeline_mode<synchronous>, transform_indices = @transform_3, window_bounds = array<i64: 128, 128>}, {pipeline_mode = #tpu.pipeline_mode<synchronous>, transform_indices = @transform_4, window_bounds = array<i64: 1, 128>}, {transform_indices = @transform_5, window_bounds = array<i64: 128, 2048>}, {transform_indices = @transform_6, window_bounds = array<i64: 8, 2048>}, {transform_indices = @transform_7, window_bounds = array<i64: 8, 128>}, {transform_indices = @transform_8, window_bounds = array<i64: 8, 128>}, {transform_indices = @transform_9, window_bounds = array<i64: 8, 128>}]} {
    %c0 = arith.constant 0 : index
    %0 = memref.load %arg2[%c0] : memref<1xf32, #tpu.memory_space<smem>>
    %c0_i32 = arith.constant 0 : i32
    %1 = arith.cmpi eq, %arg1, %c0_i32 : i32
    %2 = arith.extui %1 : i1 to i32
    %c0_i32_0 = arith.constant 0 : i32
    %3 = arith.cmpi ne, %2, %c0_i32_0 : i32
    scf.if %3 {
      %c0_21 = arith.constant 0 : index
      %c0_22 = arith.constant 0 : index
      %38 = vector.load %arg3[%c0_21, %c0_22] : memref<8x128xbf16, #tpu.memory_space<vmem>>, vector<8x128xbf16>
      %c0_23 = arith.constant 0 : index
      %c0_24 = arith.constant 0 : index
      %39 = vector.load %arg4[%c0_23, %c0_24] : memref<8x128xbf16, #tpu.memory_space<vmem>>, vector<8x128xbf16>
      %40 = tpu.concatenate %38, %39 in 0 : vector<8x128xbf16>, vector<8x128xbf16> -> vector<16x128xbf16>
      %c0_25 = arith.constant 0 : index
      %c0_26 = arith.constant 0 : index
      %41 = vector.load %arg5[%c0_25, %c0_26] : memref<128x128xbf16, #tpu.memory_space<vmem>>, vector<128x128xbf16>
      %cst_27 = arith.constant dense<0.000000e+00> : vector<16x128xf32>
      %42 = tpu.matmul %40, %41, %cst_27 {dimension_numbers = #tpu.dot_dimension_numbers<[1], [0], [0], [1], [0, 0, 1, 1], [], []>} : vector<16x128xbf16>, vector<128x128xbf16>, vector<16x128xf32> -> vector<16x128xf32>
      %c0_28 = arith.constant 0 : index
      %c0_29 = arith.constant 0 : index
      %43 = vector.load %arg6[%c0_28, %c0_29] : memref<1x128xf32, #tpu.memory_space<vmem>>, vector<1x128xf32>
      %44 = vector.broadcast %43 : vector<1x128xf32> to vector<16x128xf32>
      %45 = arith.addf %42, %44 : vector<16x128xf32>
      %46 = math.tanh %45 : vector<16x128xf32>
      %47 = arith.mulf %46, %46 : vector<16x128xf32>
      %cst_30 = arith.constant dense<0.000000e+00> : vector<16xf32>
      %48 = vector.multi_reduction <add>, %47, %cst_30 [1] : vector<16x128xf32> to vector<16xf32>
      %49 = vector.shape_cast %48 : vector<16xf32> to vector<16x1xf32>
      %cst_31 = arith.constant 1.000000e-24 : f32
      %50 = vector.broadcast %cst_31 : f32 to vector<16x1xf32>
      %51 = arith.maximumf %49, %50 : vector<16x1xf32>
      %52 = math.rsqrt %51 : vector<16x1xf32>
      %53 = vector.broadcast %52 : vector<16x1xf32> to vector<16x128xf32>
      %54 = arith.mulf %46, %53 : vector<16x128xf32>
      %55 = vector.extract_strided_slice %54 {offsets = [0, 0], sizes = [8, 128], strides = [1, 1]} : vector<16x128xf32> to vector<8x128xf32>
      %56 = vector.broadcast %0 : f32 to vector<8x128xf32>
      %57 = arith.mulf %55, %56 : vector<8x128xf32>
      %58 = vector.extract_strided_slice %54 {offsets = [8, 0], sizes = [8, 128], strides = [1, 1]} : vector<16x128xf32> to vector<8x128xf32>
      %59 = arith.mulf %57, %58 : vector<8x128xf32>
      %cst_32 = arith.constant dense<0.000000e+00> : vector<8xf32>
      %60 = vector.multi_reduction <add>, %59, %cst_32 [1] : vector<8x128xf32> to vector<8xf32>
      %61 = vector.shape_cast %60 : vector<8xf32> to vector<8x1xf32>
      %62 = arith.truncf %57 : vector<8x128xf32> to vector<8x128xbf16>
      %c0_33 = arith.constant 0 : index
      %c0_34 = arith.constant 0 : index
      %63 = vector.load %arg12[%c0_33, %c0_34] : memref<8x128xbf16, #tpu.memory_space<vmem>>, vector<8x128xbf16>
      tpu.vector_store %arg12[%c0_33, %c0_34], %62 {strides = array<i32>} : memref<8x128xbf16, #tpu.memory_space<vmem>>, vector<8x128xbf16>,
      %c0_35 = arith.constant 0 : index
      %c0_36 = arith.constant 0 : index
      %64 = vector.load %arg13[%c0_35, %c0_36] : memref<8x1xf32, #tpu.memory_space<vmem>>, vector<8x1xf32>
      tpu.vector_store %arg13[%c0_35, %c0_36], %61 {strides = array<i32>} : memref<8x1xf32, #tpu.memory_space<vmem>>, vector<8x1xf32>,
      %65 = vector.broadcast %0 : f32 to vector<8x1xf32>
      %66 = arith.subf %61, %65 : vector<8x1xf32>
      %67 = math.exp %66 : vector<8x1xf32>
      %c0_37 = arith.constant 0 : index
      %c0_38 = arith.constant 0 : index
      %68 = vector.load %arg14[%c0_37, %c0_38] : memref<8x1xf32, #tpu.memory_space<vmem>>, vector<8x1xf32>
      tpu.vector_store %arg14[%c0_37, %c0_38], %67 {strides = array<i32>} : memref<8x1xf32, #tpu.memory_space<vmem>>, vector<8x1xf32>,
      %cst_39 = arith.constant 0.000000e+00 : f32
      %69 = vector.broadcast %cst_39 : f32 to vector<8x1xf32>
      %c0_40 = arith.constant 0 : index
      %c0_41 = arith.constant 0 : index
      %70 = vector.load %arg15[%c0_40, %c0_41] : memref<8x1xf32, #tpu.memory_space<vmem>>, vector<8x1xf32>
      tpu.vector_store %arg15[%c0_40, %c0_41], %69 {strides = array<i32>} : memref<8x1xf32, #tpu.memory_space<vmem>>, vector<8x1xf32>,
      %71 = vector.shape_cast %61 : vector<8x1xf32> to vector<8x1xf32>
      %72 = vector.broadcast %71 : vector<8x1xf32> to vector<8x128xf32>
      %73 = arith.truncf %72 : vector<8x128xf32> to vector<8x128xbf16>
      %c0_42 = arith.constant 0 : index
      %c0_43 = arith.constant 0 : index
      %74 = vector.load %arg9[%c0_42, %c0_43] : memref<8x128xbf16, #tpu.memory_space<vmem>>, vector<8x128xbf16>
      tpu.vector_store %arg9[%c0_42, %c0_43], %73 {strides = array<i32>} : memref<8x128xbf16, #tpu.memory_space<vmem>>, vector<8x128xbf16>,
    } else {
    }
    %c0_1 = arith.constant 0 : index
    %c0_2 = arith.constant 0 : index
    %4 = vector.load %arg12[%c0_1, %c0_2] : memref<8x128xbf16, #tpu.memory_space<vmem>>, vector<8x128xbf16>
    %c0_3 = arith.constant 0 : index
    %c0_4 = arith.constant 0 : index
    %5 = vector.load %arg7[%c0_3, %c0_4] : memref<128x2048xbf16, #tpu.memory_space<vmem>>, vector<128x2048xbf16>
    %cst = arith.constant dense<0.000000e+00> : vector<8x2048xf32>
    %6 = tpu.matmul %4, %5, %cst {dimension_numbers = #tpu.dot_dimension_numbers<[1], [0], [0], [1], [0, 0, 1, 1], [], []>} : vector<8x128xbf16>, vector<128x2048xbf16>, vector<8x2048xf32> -> vector<8x2048xf32>
    %7 = arith.truncf %6 : vector<8x2048xf32> to vector<8x2048xbf16>
    %c0_5 = arith.constant 0 : index
    %c0_6 = arith.constant 0 : index
    %8 = vector.load %arg8[%c0_5, %c0_6] : memref<8x2048xbf16, #tpu.memory_space<vmem>>, vector<8x2048xbf16>
    tpu.vector_store %arg8[%c0_5, %c0_6], %7 {strides = array<i32>} : memref<8x2048xbf16, #tpu.memory_space<vmem>>, vector<8x2048xbf16>,
    %c2048_i32 = arith.constant 2048 : i32
    %9 = arith.muli %arg1, %c2048_i32 : i32
    %10 = tpu.iota {dimensions = array<i32: 1>} : vector<8x2048xi32>
    %11 = vector.broadcast %9 : i32 to vector<8x2048xi32>
    %12 = arith.addi %11, %10 : vector<8x2048xi32>
    %c4000_i32 = arith.constant 4000 : i32
    %13 = vector.broadcast %c4000_i32 : i32 to vector<8x2048xi32>
    %14 = arith.cmpi slt, %12, %13 : vector<8x2048xi32>
    %cst_7 = arith.constant 0xFF800000 : f32
    %15 = vector.broadcast %cst_7 : f32 to vector<8x2048xf32>
    %16 = arith.select %14, %6, %15 : vector<8x2048xi1>, vector<8x2048xf32>
    %c0_8 = arith.constant 0 : index
    %c0_9 = arith.constant 0 : index
    %17 = vector.load %arg14[%c0_8, %c0_9] : memref<8x1xf32, #tpu.memory_space<vmem>>, vector<8x1xf32>
    %18 = vector.broadcast %0 : f32 to vector<8x2048xf32>
    %19 = arith.subf %16, %18 : vector<8x2048xf32>
    %20 = math.exp %19 : vector<8x2048xf32>
    %cst_10 = arith.constant dense<0.000000e+00> : vector<8xf32>
    %21 = vector.multi_reduction <add>, %20, %cst_10 [1] : vector<8x2048xf32> to vector<8xf32>
    %22 = vector.shape_cast %21 : vector<8xf32> to vector<8x1xf32>
    %23 = arith.addf %17, %22 : vector<8x1xf32>
    %c0_11 = arith.constant 0 : index
    %c0_12 = arith.constant 0 : index
    %24 = vector.load %arg14[%c0_11, %c0_12] : memref<8x1xf32, #tpu.memory_space<vmem>>, vector<8x1xf32>
    tpu.vector_store %arg14[%c0_11, %c0_12], %23 {strides = array<i32>} : memref<8x1xf32, #tpu.memory_space<vmem>>, vector<8x1xf32>,
    %c0_13 = arith.constant 0 : index
    %c0_14 = arith.constant 0 : index
    %25 = vector.load %arg15[%c0_13, %c0_14] : memref<8x1xf32, #tpu.memory_space<vmem>>, vector<8x1xf32>
    %c0_15 = arith.constant 0 : index
    %c0_16 = arith.constant 0 : index
    %26 = vector.load %arg13[%c0_15, %c0_16] : memref<8x1xf32, #tpu.memory_space<vmem>>, vector<8x1xf32>
    %27 = vector.broadcast %26 : vector<8x1xf32> to vector<8x2048xf32>
    %28 = arith.cmpf ogt, %16, %27 : vector<8x2048xf32>
    %29 = arith.extui %28 : vector<8x2048xi1> to vector<8x2048xi32>
    %30 = arith.sitofp %29 : vector<8x2048xi32> to vector<8x2048xf32>
    %cst_17 = arith.constant dense<0.000000e+00> : vector<8xf32>
    %31 = vector.multi_reduction <add>, %30, %cst_17 [1] : vector<8x2048xf32> to vector<8xf32>
    %32 = vector.shape_cast %31 : vector<8xf32> to vector<8x1xf32>
    %33 = arith.addf %25, %32 : vector<8x1xf32>
    %c0_18 = arith.constant 0 : index
    %c0_19 = arith.constant 0 : index
    %34 = vector.load %arg15[%c0_18, %c0_19] : memref<8x1xf32, #tpu.memory_space<vmem>>, vector<8x1xf32>
    tpu.vector_store %arg15[%c0_18, %c0_19], %33 {strides = array<i32>} : memref<8x1xf32, #tpu.memory_space<vmem>>, vector<8x1xf32>,
    %c1_i32 = arith.constant 1 : i32
    %35 = arith.cmpi eq, %arg1, %c1_i32 : i32
    %36 = arith.extui %35 : i1 to i32
    %c0_i32_20 = arith.constant 0 : i32
    %37 = arith.cmpi ne, %36, %c0_i32_20 : i32
    scf.if %37 {
      %c0_21 = arith.constant 0 : index
      %c0_22 = arith.constant 0 : index
      %38 = vector.load %arg14[%c0_21, %c0_22] : memref<8x1xf32, #tpu.memory_space<vmem>>, vector<8x1xf32>
      %39 = math.log %38 : vector<8x1xf32>
      %40 = vector.broadcast %0 : f32 to vector<8x1xf32>
      %41 = arith.addf %40, %39 : vector<8x1xf32>
      %c0_23 = arith.constant 0 : index
      %c0_24 = arith.constant 0 : index
      %42 = vector.load %arg13[%c0_23, %c0_24] : memref<8x1xf32, #tpu.memory_space<vmem>>, vector<8x1xf32>
      %43 = arith.subf %41, %42 : vector<8x1xf32>
      %44 = vector.shape_cast %43 : vector<8x1xf32> to vector<8x1xf32>
      %45 = vector.broadcast %44 : vector<8x1xf32> to vector<8x128xf32>
      %c0_25 = arith.constant 0 : index
      %c0_26 = arith.constant 0 : index
      %46 = vector.load %arg10[%c0_25, %c0_26] : memref<8x128xf32, #tpu.memory_space<vmem>>, vector<8x128xf32>
      tpu.vector_store %arg10[%c0_25, %c0_26], %45 {strides = array<i32>} : memref<8x128xf32, #tpu.memory_space<vmem>>, vector<8x128xf32>,
      %c0_27 = arith.constant 0 : index
      %c0_28 = arith.constant 0 : index
      %47 = vector.load %arg15[%c0_27, %c0_28] : memref<8x1xf32, #tpu.memory_space<vmem>>, vector<8x1xf32>
      %48 = vector.shape_cast %47 : vector<8x1xf32> to vector<8x1xf32>
      %49 = vector.broadcast %48 : vector<8x1xf32> to vector<8x128xf32>
      %c0_29 = arith.constant 0 : index
      %c0_30 = arith.constant 0 : index
      %50 = vector.load %arg11[%c0_29, %c0_30] : memref<8x128xf32, #tpu.memory_space<vmem>>, vector<8x128xf32>
      tpu.vector_store %arg11[%c0_29, %c0_30], %49 {strides = array<i32>} : memref<8x128xf32, #tpu.memory_space<vmem>>, vector<8x128xf32>,
    } else {
    }
    return
  }
  func.func @transform_0(%arg0: i32, %arg1: i32) -> i32 {
    %c0_i32 = arith.constant 0 : i32
    %c0_i32_0 = arith.constant 0 : i32
    return %c0_i32 : i32
  }
  func.func @transform_1(%arg0: i32, %arg1: i32) -> (i32, i32) {
    %c0_i32 = arith.constant 0 : i32
    %c0_i32_0 = arith.constant 0 : i32
    return %arg0, %c0_i32 : i32, i32
  }
  func.func @transform_2(%arg0: i32, %arg1: i32) -> (i32, i32) {
    %c0_i32 = arith.constant 0 : i32
    %c0_i32_0 = arith.constant 0 : i32
    return %arg0, %c0_i32 : i32, i32
  }
  func.func @transform_3(%arg0: i32, %arg1: i32) -> (i32, i32) {
    %c0_i32 = arith.constant 0 : i32
    %c0_i32_0 = arith.constant 0 : i32
    %c0_i32_1 = arith.constant 0 : i32
    return %c0_i32, %c0_i32_0 : i32, i32
  }
  func.func @transform_4(%arg0: i32, %arg1: i32) -> (i32, i32) {
    %c0_i32 = arith.constant 0 : i32
    %c0_i32_0 = arith.constant 0 : i32
    %c0_i32_1 = arith.constant 0 : i32
    return %c0_i32, %c0_i32_0 : i32, i32
  }
  func.func @transform_5(%arg0: i32, %arg1: i32) -> (i32, i32) {
    %c0_i32 = arith.constant 0 : i32
    %c0_i32_0 = arith.constant 0 : i32
    return %c0_i32, %arg1 : i32, i32
  }
  func.func @transform_6(%arg0: i32, %arg1: i32) -> (i32, i32) {
    %c0_i32 = arith.constant 0 : i32
    return %arg0, %arg1 : i32, i32
  }
  func.func @transform_7(%arg0: i32, %arg1: i32) -> (i32, i32) {
    %c0_i32 = arith.constant 0 : i32
    %c0_i32_0 = arith.constant 0 : i32
    return %arg0, %c0_i32 : i32, i32
  }
  func.func @transform_8(%arg0: i32, %arg1: i32) -> (i32, i32) {
    %c0_i32 = arith.constant 0 : i32
    %c0_i32_0 = arith.constant 0 : i32
    return %arg0, %c0_i32 : i32, i32
  }
  func.func @transform_9(%arg0: i32, %arg1: i32) -> (i32, i32) {
    %c0_i32 = arith.constant 0 : i32
    %c0_i32_0 = arith.constant 0 : i32
    return %arg0, %c0_i32 : i32, i32
  }
}

</mosaic_0001>

<llo_original>
// kernel: tpu_custom_call.1
$region0: #{tpu_custom_call.1}
  #allocation0 [shape = 'u32[]', space=smem, size = 0x4, offset = 0x4, fixed_abs, tag = 'smem constant byte address 0x4 - core index']
  #allocation1 [shape = 'u32[72,128]{1,0:T(1,128)}', space=vmem, size = 0x9000, scoped, tag = 'internal scratch']
  #allocation2 [shape = 'bf16[8,128]{1,0:T(8,128)(2,1)}', space=vmem, size = 0x800, scoped, tag = 'scratch operand']
  #allocation3 [shape = 'f32[8,1]{1,0:T(8,128)}', space=vmem, size = 0x1000, scoped, tag = 'scratch operand']
  #allocation4 [shape = 'f32[8,1]{1,0:T(8,128)}', space=vmem, size = 0x1000, scoped, tag = 'scratch operand']
  #allocation5 [shape = 'f32[8,1]{1,0:T(8,128)}', space=vmem, size = 0x1000, scoped, tag = 'scratch operand']
  #allocation6 [shape = 'f32[1]{0:T(128)S(6)}', space=smem, size = 0x200, scoped, tag = 'scoped memory for tpu_custom_call.1']
  %s0 = inlined_call_operand.<no memory space> [shape: f32[1], index: 0, kind: input, shape index: {}]
  %s1 = inlined_call_operand.hbm [shape: bf16[8,128], index: 1, kind: input, shape index: {}]
  %s2 = inlined_call_operand.hbm [shape: bf16[8,128], index: 2, kind: input, shape index: {}]
  %s3 = inlined_call_operand.hbm [shape: bf16[128,128], index: 3, kind: input, shape index: {}]
  %s4 = inlined_call_operand.vmem [shape: f32[1,128], index: 4, kind: input, shape index: {}]
  %s5 = inlined_call_operand.hbm [shape: bf16[128,4096], index: 5, kind: input, shape index: {}]
  %s6 = inlined_call_operand.hbm [shape: bf16[8,4096], index: 6, kind: output, shape index: {0}]
  %s7 = inlined_call_operand.hbm [shape: bf16[8,128], index: 7, kind: output, shape index: {1}]
  %s8 = inlined_call_operand.hbm [shape: f32[8,128], index: 8, kind: output, shape index: {2}]
  %s9 = inlined_call_operand.hbm [shape: f32[8,128], index: 9, kind: output, shape index: {3}]
  %10 = xla_tuple %s6, %s7, %s8, %s9
  %s11 = sld [smem:[#allocation0]]
  $region105: #{tpu_custom_call.1} parent=0
    _
  %s13 = ssub.s32 1, %s11
  %s14 = scalar_select 0, %s13, %s11
  %15 = sst [smem:[#allocation6]] %s0
  $region1: #{tpu_custom_call.1} parent=0
    #allocation7 [shape = 'u8[2048]{0}', space=vmem, size = 0x800, scoped, tag = 'input window, operand 1, single buffered']
    #allocation8 [shape = 's32[2]{0}', space=sflag, size = 0x8, scoped, tag = 'scoped memory for tpu_custom_call.1']
    #allocation9 [shape = 's32[2]{0}', space=sflag, size = 0x8, scoped, tag = 'scoped memory for tpu_custom_call.1']
    #allocation10 [shape = 'u8[2048]{0}', space=vmem, size = 0x800, scoped, tag = 'input window, operand 2, single buffered']
    #allocation11 [shape = 's32[1]{0}', space=sflag, size = 0x4, scoped, tag = 'scoped memory for tpu_custom_call.1']
    #allocation12 [shape = 'u8[32768]{0}', space=vmem, size = 0x8000, scoped, tag = 'input window, operand 3, single buffered']
    #allocation13 [shape = 'u8[1048576]{0}', space=vmem, size = 0x100000, scoped, tag = 'input window, operand 5']
    #allocation14 [shape = 's32[2]{0}', space=sflag, size = 0x8, scoped, tag = 'scoped memory for tpu_custom_call.1']
    #allocation15 [shape = 'u8[65536]{0}', space=vmem, size = 0x10000, scoped, tag = 'output window, operand 0']
    #allocation16 [shape = 'u8[2048]{0}', space=vmem, size = 0x800, scoped, tag = 'output window, operand 1, single buffered']
    #allocation17 [shape = 's32[1]{0}', space=sflag, size = 0x4, scoped, tag = 'scoped memory for tpu_custom_call.1']
    #allocation18 [shape = 'u8[4096]{0}', space=vmem, size = 0x1000, scoped, tag = 'output window, operand 2, single buffered']
    #allocation19 [shape = 'u8[4096]{0}', space=vmem, size = 0x1000, scoped, tag = 'output window, operand 3, single buffered']
    #allocation20 [shape = 's32[1]{0}', space=sflag, size = 0x4, scoped, tag = 'scoped memory for tpu_custom_call.1']
    %16 = vsyncpa [#allocation8], 0
    %17 = vsyncpa [#allocation11], 0
    %18 = vsyncpa [#allocation14], 0
    %s19 = scalar_lea.sflag [#allocation14], 1
    %20 = vsyncpa %s19, 0
    %21 = vsyncpa [#allocation9], 0
    %s22 = scalar_lea.sflag [#allocation9], 1
    %23 = vsyncpa %s22, 0
    %24 = vsyncpa [#allocation17], 0
    %25 = vsyncpa [#allocation20], 0
    loop: start=0, step=1, limit=4
    $region2: #{tpu_custom_call.1} parent=1 // loop_pre_header
      _
    $region3: #{tpu_custom_call.1} parent=1 // loop_header
      %s27 = sphi 0, %s31
      %p28 = scmp.ge.s32.totalorder %s27, 4
      %s34 = sphi 0, %s46
      %s35 = sphi 0, %s42
      %s36 = sphi 0, %s34
      %s37 = sphi 0, %s35
      %s38 = sphi 0, %s36
      %s39 = sphi 0, %s37
      %s47 = sphi 0, %s47
      %s49 = sphi 0, %s47
      %s50 = sphi 0, %s49
      %s64 = sphi 0, %s50
      %s70 = sphi 0, %s72
      %s73 = sphi 0, %s70
      %s74 = sphi 0, %s73
      %s90 = sphi 0, %s74
      %s96 = sphi 0, %s98
      %s99 = sphi 0, %s96
      %s100 = sphi 0, %s99
      %s116 = sphi 0, %s100
      %s120 = sphi 0, %s120
      %s122 = sphi 0, %s120
      %s123 = sphi 0, %s122
      %s137 = sphi 0, %s123
      %s141 = sphi 0, %s141
      %s143 = sphi 0, %s141
      %s144 = sphi 0, %s143
      %s158 = sphi 0, %s144
      %s164 = sphi 0, %s166
      %s167 = sphi 0, %s164
      %s168 = sphi 0, %s167
      %s184 = sphi 0, %s168
      %s192 = sphi 0, %s194
      %s195 = sphi 0, %s192
      %s196 = sphi 0, %s195
      %s212 = sphi 0, %s196
      %s218 = sphi 0, %s220
      %s221 = sphi 0, %s218
      %s222 = sphi 0, %s221
      %s238 = sphi 0, %s222
      %s244 = sphi 0, %s246
      %s247 = sphi 0, %s244
      %s248 = sphi 0, %s247
      %s264 = sphi 0, %s248
      %s270 = sphi 0, %s272
      %s273 = sphi 0, %s270
      %s274 = sphi 0, %s273
      %s290 = sphi 0, %s274
    $region4: #{tpu_custom_call.1} parent=1 // loop_header_branch
      %30 = sbr.rel (%p28) target = $region8
    $region5: #{tpu_custom_call.1} parent=1 // loop_body
      %s32 = ssub.s32 %s27, 1
      %s33 = ssub.s32 %s27, 2
      %s40 = sadd.s32 1, %s35
      %p41 = scmp.ge.s32.totalorder %s40, 2
      %s42 = scalar_select %p41, 0, %s40
      %s43 = sadd.s32 1, %s34
      %s44 = scalar_select %p41, %s43, %s34
      %p45 = scmp.ge.s32.totalorder %s44, 1
      %s46 = scalar_select %p45, 0, %s44
      %s48 = sadd.s32 %s47, 1
      %p51 = scmp.eq.s32.totalorder %s27, 1
      %p52 = scmp.ne.s32.totalorder %s47, %s49
      %p53 = scmp.eq.s32.totalorder %s27, 0
      %p54 = por %p52, %p53
      %p55 = scmp.ne.s32.totalorder %s47, %s49
      %p56 = scmp.eq.s32.totalorder %s32, 1
      %p57 = por %p55, %p56
      %p58 = scmp.ne.s32.totalorder %s49, %s50
      %p59 = scmp.eq.s32.totalorder %s32, 0
      %p60 = por %p58, %p59
      %p61 = scmp.ne.s32.totalorder %s49, %s50
      %p62 = scmp.eq.s32.totalorder %s33, 1
      %p63 = por %p61, %p62
      %p65 = scmp.ne.s32.totalorder %s50, %s64
      %p66 = scmp.eq.s32.totalorder %s33, 0
      %p67 = por %p65, %p66
      %s68 = ssub.s32 %s34, %s46
      %p69 = scmp.eq.s32.totalorder %s68, 0
      %s71 = sadd.s32 %s70, 1
      %s72 = scalar_select %p69, %s70, %s71
      %p75 = pneg %p69
      %p76 = scmp.eq.s32.totalorder %s27, 1
      %p77 = por %p75, %p76
      %p78 = scmp.ne.s32.totalorder %s70, %s73
      %p79 = scmp.eq.s32.totalorder %s27, 0
      %p80 = por %p78, %p79
      %p81 = scmp.ne.s32.totalorder %s70, %s73
      %p82 = scmp.eq.s32.totalorder %s32, 1
      %p83 = por %p81, %p82
      %p84 = scmp.ne.s32.totalorder %s73, %s74
      %p85 = scmp.eq.s32.totalorder %s32, 0
      %p86 = por %p84, %p85
      %p87 = scmp.ne.s32.totalorder %s73, %s74
      %p88 = scmp.eq.s32.totalorder %s33, 1
      %p89 = por %p87, %p88
      %p91 = scmp.ne.s32.totalorder %s74, %s90
      %p92 = scmp.eq.s32.totalorder %s33, 0
      %p93 = por %p91, %p92
      %s94 = ssub.s32 %s34, %s46
      %p95 = scmp.eq.s32.totalorder %s94, 0
      %s97 = sadd.s32 %s96, 1
      %s98 = scalar_select %p95, %s96, %s97
      %p101 = pneg %p95
      %p102 = scmp.eq.s32.totalorder %s27, 1
      %p103 = por %p101, %p102
      %p104 = scmp.ne.s32.totalorder %s96, %s99
      %p105 = scmp.eq.s32.totalorder %s27, 0
      %p106 = por %p104, %p105
      %p107 = scmp.ne.s32.totalorder %s96, %s99
      %p108 = scmp.eq.s32.totalorder %s32, 1
      %p109 = por %p107, %p108
      %p110 = scmp.ne.s32.totalorder %s99, %s100
      %p111 = scmp.eq.s32.totalorder %s32, 0
      %p112 = por %p110, %p111
      %p113 = scmp.ne.s32.totalorder %s99, %s100
      %p114 = scmp.eq.s32.totalorder %s33, 1
      %p115 = por %p113, %p114
      %p117 = scmp.ne.s32.totalorder %s100, %s116
      %p118 = scmp.eq.s32.totalorder %s33, 0
      %p119 = por %p117, %p118
      %s121 = sadd.s32 %s120, 1
      %p124 = scmp.eq.s32.totalorder %s27, 1
      %p125 = scmp.ne.s32.totalorder %s120, %s122
      %p126 = scmp.eq.s32.totalorder %s27, 0
      %p127 = por %p125, %p126
      %p128 = scmp.ne.s32.totalorder %s120, %s122
      %p129 = scmp.eq.s32.totalorder %s32, 1
      %p130 = por %p128, %p129
      %p131 = scmp.ne.s32.totalorder %s122, %s123
      %p132 = scmp.eq.s32.totalorder %s32, 0
      %p133 = por %p131, %p132
      %p134 = scmp.ne.s32.totalorder %s122, %s123
      %p135 = scmp.eq.s32.totalorder %s33, 1
      %p136 = por %p134, %p135
      %p138 = scmp.ne.s32.totalorder %s123, %s137
      %p139 = scmp.eq.s32.totalorder %s33, 0
      %p140 = por %p138, %p139
      %s142 = sadd.s32 %s141, 1
      %p145 = scmp.eq.s32.totalorder %s27, 1
      %p146 = scmp.ne.s32.totalorder %s141, %s143
      %p147 = scmp.eq.s32.totalorder %s27, 0
      %p148 = por %p146, %p147
      %p149 = scmp.ne.s32.totalorder %s141, %s143
      %p150 = scmp.eq.s32.totalorder %s32, 1
      %p151 = por %p149, %p150
      %p152 = scmp.ne.s32.totalorder %s143, %s144
      %p153 = scmp.eq.s32.totalorder %s32, 0
      %p154 = por %p152, %p153
      %p155 = scmp.ne.s32.totalorder %s143, %s144
      %p156 = scmp.eq.s32.totalorder %s33, 1
      %p157 = por %p155, %p156
      %p159 = scmp.ne.s32.totalorder %s144, %s158
      %p160 = scmp.eq.s32.totalorder %s33, 0
      %p161 = por %p159, %p160
      %s162 = ssub.s32 %s35, %s42
      %p163 = scmp.eq.s32.totalorder %s162, 0
      %s165 = sadd.s32 %s164, 1
      %s166 = scalar_select %p163, %s164, %s165
      %p169 = pneg %p163
      %p170 = scmp.eq.s32.totalorder %s27, 1
      %p171 = por %p169, %p170
      %p172 = scmp.ne.s32.totalorder %s164, %s167
      %p173 = scmp.eq.s32.totalorder %s27, 0
      %p174 = por %p172, %p173
      %p175 = scmp.ne.s32.totalorder %s164, %s167
      %p176 = scmp.eq.s32.totalorder %s32, 1
      %p177 = por %p175, %p176
      %p178 = scmp.ne.s32.totalorder %s167, %s168
      %p179 = scmp.eq.s32.totalorder %s32, 0
      %p180 = por %p178, %p179
      %p181 = scmp.ne.s32.totalorder %s167, %s168
      %p182 = scmp.eq.s32.totalorder %s33, 1
      %p183 = por %p181, %p182
      %p185 = scmp.ne.s32.totalorder %s168, %s184
      %p186 = scmp.eq.s32.totalorder %s33, 0
      %p187 = por %p185, %p186
      %s188 = ssub.s32 %s34, %s46
      %s189 = ssub.s32 %s35, %s42
      %s190 = sor.u32 %s188, %s189
      %p191 = scmp.eq.s32.totalorder %s190, 0
      %s193 = sadd.s32 %s192, 1
      %s194 = scalar_select %p191, %s192, %s193
      %p197 = pneg %p191
      %p198 = scmp.eq.s32.totalorder %s27, 1
      %p199 = por %p197, %p198
      %p200 = scmp.ne.s32.totalorder %s192, %s195
      %p201 = scmp.eq.s32.totalorder %s27, 0
      %p202 = por %p200, %p201
      %p203 = scmp.ne.s32.totalorder %s192, %s195
      %p204 = scmp.eq.s32.totalorder %s32, 1
      %p205 = por %p203, %p204
      %p206 = scmp.ne.s32.totalorder %s195, %s196
      %p207 = scmp.eq.s32.totalorder %s32, 0
      %p208 = por %p206, %p207
      %p209 = scmp.ne.s32.totalorder %s195, %s196
      %p210 = scmp.eq.s32.totalorder %s33, 1
      %p211 = por %p209, %p210
      %p213 = scmp.ne.s32.totalorder %s196, %s212
      %p214 = scmp.eq.s32.totalorder %s33, 0
      %p215 = por %p213, %p214
      %s216 = ssub.s32 %s34, %s46
      %p217 = scmp.eq.s32.totalorder %s216, 0
      %s219 = sadd.s32 %s218, 1
      %s220 = scalar_select %p217, %s218, %s219
      %p223 = pneg %p217
      %p224 = scmp.eq.s32.totalorder %s27, 1
      %p225 = por %p223, %p224
      %p226 = scmp.ne.s32.totalorder %s218, %s221
      %p227 = scmp.eq.s32.totalorder %s27, 0
      %p228 = por %p226, %p227
      %p229 = scmp.ne.s32.totalorder %s218, %s221
      %p230 = scmp.eq.s32.totalorder %s32, 1
      %p231 = por %p229, %p230
      %p232 = scmp.ne.s32.totalorder %s221, %s222
      %p233 = scmp.eq.s32.totalorder %s32, 0
      %p234 = por %p232, %p233
      %p235 = scmp.ne.s32.totalorder %s221, %s222
      %p236 = scmp.eq.s32.totalorder %s33, 1
      %p237 = por %p235, %p236
      %p239 = scmp.ne.s32.totalorder %s222, %s238
      %p240 = scmp.eq.s32.totalorder %s33, 0
      %p241 = por %p239, %p240
      %s242 = ssub.s32 %s34, %s46
      %p243 = scmp.eq.s32.totalorder %s242, 0
      %s245 = sadd.s32 %s244, 1
      %s246 = scalar_select %p243, %s244, %s245
      %p249 = pneg %p243
      %p250 = scmp.eq.s32.totalorder %s27, 1
      %p251 = por %p249, %p250
      %p252 = scmp.ne.s32.totalorder %s244, %s247
      %p253 = scmp.eq.s32.totalorder %s27, 0
      %p254 = por %p252, %p253
      %p255 = scmp.ne.s32.totalorder %s244, %s247
      %p256 = scmp.eq.s32.totalorder %s32, 1
      %p257 = por %p255, %p256
      %p258 = scmp.ne.s32.totalorder %s247, %s248
      %p259 = scmp.eq.s32.totalorder %s32, 0
      %p260 = por %p258, %p259
      %p261 = scmp.ne.s32.totalorder %s247, %s248
      %p262 = scmp.eq.s32.totalorder %s33, 1
      %p263 = por %p261, %p262
      %p265 = scmp.ne.s32.totalorder %s248, %s264
      %p266 = scmp.eq.s32.totalorder %s33, 0
      %p267 = por %p265, %p266
      %s268 = ssub.s32 %s34, %s46
      %p269 = scmp.eq.s32.totalorder %s268, 0
      %s271 = sadd.s32 %s270, 1
      %s272 = scalar_select %p269, %s270, %s271
      %p275 = pneg %p269
      %p276 = scmp.eq.s32.totalorder %s27, 1
      %p277 = por %p275, %p276
      %p278 = scmp.ne.s32.totalorder %s270, %s273
      %p279 = scmp.eq.s32.totalorder %s27, 0
      %p280 = por %p278, %p279
      %p281 = scmp.ne.s32.totalorder %s270, %s273
      %p282 = scmp.eq.s32.totalorder %s32, 1
      %p283 = por %p281, %p282
      %p284 = scmp.ne.s32.totalorder %s273, %s274
      %p285 = scmp.eq.s32.totalorder %s32, 0
      %p286 = por %p284, %p285
      %p287 = scmp.ne.s32.totalorder %s273, %s274
      %p288 = scmp.eq.s32.totalorder %s33, 1
      %p289 = por %p287, %p288
      %p291 = scmp.ne.s32.totalorder %s274, %s290
      %p292 = scmp.eq.s32.totalorder %s33, 0
      %p293 = por %p291, %p292
      %p294 = scmp.le.s32.totalorder 1, %s27
      %p295 = scmp.lt.s32.totalorder %s27, 3
      %p296 = pnand %p294, %p295
      %p297 = pneg %p296
      // Predicated region
      $region9: #{tpu_custom_call.1} parent=5 // pred_check
        _
      $region10: #{tpu_custom_call.1} parent=5 // pred_check_branch
        %299 = sbr.rel (%p296) target = $region12
      $region11: #{tpu_custom_call.1} parent=5 // pred_region
        %s300 = ssub.s32 %s27, 1
        // Predicated region
        $region13: #{tpu_custom_call.1} parent=11 // pred_check
          %p301 = pneg %p60
        $region14: #{tpu_custom_call.1} parent=11 // pred_check_branch
          %303 = sbr.rel (%p301) target = $region16
        $region15: #{tpu_custom_call.1} parent=11 // pred_region
          _
        $region16: #{tpu_custom_call.1} parent=11 // pred_fallthru
          _
        // Predicated region
        $region17: #{tpu_custom_call.1} parent=11 // pred_check
          %p304 = pneg %p86
        $region18: #{tpu_custom_call.1} parent=11 // pred_check_branch
          %306 = sbr.rel (%p304) target = $region20
        $region19: #{tpu_custom_call.1} parent=11 // pred_region
          %308 = vsyncadd [#allocation8], 0
          %s309 = smul.addr %s36, 4
          %s310 = scalar_lea.hbm %s1, %s309
          %s312 = sshll.u32 %s310, 4
          %s313 = int_to_ptr.hbm [resolvable:$true] %s312
          %s314 = sshll.u32 [#allocation7], 4
          %s315 = int_to_ptr.vmem [resolvable:$true] %s314
          %317 = dma.hbm_to_vmem [thread:$0]  %s313, 64, %s315, [#allocation8]
        $region20: #{tpu_custom_call.1} parent=11 // pred_fallthru
          _
        // Predicated region
        $region21: #{tpu_custom_call.1} parent=11 // pred_check
          %p318 = pneg %p112
        $region22: #{tpu_custom_call.1} parent=11 // pred_check_branch
          %320 = sbr.rel (%p318) target = $region24
        $region23: #{tpu_custom_call.1} parent=11 // pred_region
          %322 = vsyncadd [#allocation11], 0
          %s323 = smul.addr %s36, 4
          %s324 = scalar_lea.hbm %s2, %s323
          %s326 = sshll.u32 %s324, 4
          %s327 = int_to_ptr.hbm [resolvable:$true] %s326
          %s328 = sshll.u32 [#allocation10], 4
          %s329 = int_to_ptr.vmem [resolvable:$true] %s328
          %331 = dma.hbm_to_vmem [thread:$0]  %s327, 64, %s329, [#allocation11]
        $region24: #{tpu_custom_call.1} parent=11 // pred_fallthru
          _
        // Predicated region
        $region25: #{tpu_custom_call.1} parent=11 // pred_check
          %p332 = pneg %p133
        $region26: #{tpu_custom_call.1} parent=11 // pred_check_branch
          %334 = sbr.rel (%p332) target = $region28
        $region27: #{tpu_custom_call.1} parent=11 // pred_region
          %336 = vsyncadd [#allocation11], 0
          %s337 = sshll.u32 %s3, 4
          %s338 = int_to_ptr.hbm [resolvable:$true] %s337
          %s339 = sshll.u32 [#allocation12], 4
          %s340 = int_to_ptr.vmem [resolvable:$true] %s339
          %345 = dma.hbm_to_vmem [thread:$0]  %s338, 1024, %s340, [#allocation11], 64, 64, 4
        $region28: #{tpu_custom_call.1} parent=11 // pred_fallthru
          _
        // Predicated region
        $region29: #{tpu_custom_call.1} parent=11 // pred_check
          %p346 = pneg %p154
        $region30: #{tpu_custom_call.1} parent=11 // pred_check_branch
          %348 = sbr.rel (%p346) target = $region32
        $region31: #{tpu_custom_call.1} parent=11 // pred_region
          _
        $region32: #{tpu_custom_call.1} parent=11 // pred_fallthru
          _
      $region12: #{tpu_custom_call.1} parent=5 // pred_fallthru
        _
      %p349 = scmp.lt.s32.totalorder %s27, 2
      // Predicated region
      $region33: #{tpu_custom_call.1} parent=5 // pred_check
        %p350 = pneg %p349
      $region34: #{tpu_custom_call.1} parent=5 // pred_check_branch
        %352 = sbr.rel (%p350) target = $region36
      $region35: #{tpu_custom_call.1} parent=5 // pred_region
        // Predicated region
        $region37: #{tpu_custom_call.1} parent=35 // pred_check
          %p353 = pneg %p174
        $region38: #{tpu_custom_call.1} parent=35 // pred_check_branch
          %355 = sbr.rel (%p353) target = $region40
        $region39: #{tpu_custom_call.1} parent=35 // pred_region
          %s356 = sand.u32 %s164, 1
          %s357 = scalar_lea.sflag [#allocation14], %s356
          %s358 = sand.u32 %s164, 1
          %s359 = smul.addr %s358, 1024
          %s360 = scalar_lea.vmem [#allocation13], %s359
          %s361 = smul.u32 16, %s35
          %363 = vsyncadd %s357, 0
          %s364 = smul.addr %s361, 4
          %s365 = scalar_lea.hbm %s5, %s364
          %s366 = sshll.u32 %s365, 4
          %s367 = int_to_ptr.hbm [resolvable:$true] %s366
          %s368 = sshll.u32 %s360, 4
          %s369 = int_to_ptr.vmem [resolvable:$true] %s368
          %374 = dma.hbm_to_vmem [thread:$0]  %s367, 16384, %s369, %s357, 2048, 1024, 64
        $region40: #{tpu_custom_call.1} parent=35 // pred_fallthru
          _
      $region36: #{tpu_custom_call.1} parent=5 // pred_fallthru
        _
      %p375 = scmp.le.s32.totalorder 1, %s27
      %p376 = scmp.lt.s32.totalorder %s27, 3
      %p377 = pnand %p375, %p376
      %p378 = pneg %p377
      // Predicated region
      $region41: #{tpu_custom_call.1} parent=5 // pred_check
        _
      $region42: #{tpu_custom_call.1} parent=5 // pred_check_branch
        %380 = sbr.rel (%p377) target = $region44
      $region43: #{tpu_custom_call.1} parent=5 // pred_region
        %s381 = ssub.s32 %s27, 1
        // Predicated region
        $region45: #{tpu_custom_call.1} parent=43 // pred_check
          %p382 = pneg %p86
        $region46: #{tpu_custom_call.1} parent=43 // pred_check_branch
          %384 = sbr.rel (%p382) target = $region48
        $region47: #{tpu_custom_call.1} parent=43 // pred_region
          %386 = dma.done [#allocation8], 64
        $region48: #{tpu_custom_call.1} parent=43 // pred_fallthru
          _
        // Predicated region
        $region49: #{tpu_custom_call.1} parent=43 // pred_check
          %p387 = pneg %p112
        $region50: #{tpu_custom_call.1} parent=43 // pred_check_branch
          %389 = sbr.rel (%p387) target = $region52
        $region51: #{tpu_custom_call.1} parent=43 // pred_region
          %391 = dma.done [#allocation11], 64
        $region52: #{tpu_custom_call.1} parent=43 // pred_fallthru
          _
        // Predicated region
        $region53: #{tpu_custom_call.1} parent=43 // pred_check
          %p392 = pneg %p133
        $region54: #{tpu_custom_call.1} parent=43 // pred_check_branch
          %394 = sbr.rel (%p392) target = $region56
        $region55: #{tpu_custom_call.1} parent=43 // pred_region
          %396 = dma.done [#allocation11], 1024
        $region56: #{tpu_custom_call.1} parent=43 // pred_fallthru
          _
        %s397 = sand.u32 %s167, 1
        %s398 = scalar_lea.sflag [#allocation14], %s397
        %s399 = sand.u32 %s167, 1
        %s400 = smul.addr %s399, 1024
        %s401 = scalar_lea.vmem [#allocation13], %s400
        // Predicated region
        $region57: #{tpu_custom_call.1} parent=43 // pred_check
          %p402 = pneg %p180
        $region58: #{tpu_custom_call.1} parent=43 // pred_check_branch
          %404 = sbr.rel (%p402) target = $region60
        $region59: #{tpu_custom_call.1} parent=43 // pred_region
          %406 = dma.done %s398, 16384
        $region60: #{tpu_custom_call.1} parent=43 // pred_fallthru
          _
        %p407 = pneg %p60
        %p408 = pneg %p57
        %p409 = pneg %p86
        %p410 = pneg %p83
        %p411 = pneg %p112
        %p412 = pneg %p109
        %p413 = pneg %p133
        %p414 = pneg %p130
        %p415 = pneg %p154
        %p416 = pneg %p151
        %s417 = sand.u32 %s167, 1
        %s418 = scalar_lea.sflag [#allocation14], %s417
        %s419 = sand.u32 %s167, 1
        %s420 = smul.addr %s419, 1024
        %s421 = scalar_lea.vmem [#allocation13], %s420
        %p422 = pneg %p180
        %p423 = pneg %p177
        %p424 = pneg %p208
        %p425 = pneg %p205
        %s426 = sand.u32 %s195, 1
        %s427 = scalar_lea.sflag [#allocation9], %s426
        %s428 = sand.u32 %s195, 1
        %s429 = smul.addr %s428, 64
        %s430 = scalar_lea.vmem [#allocation15], %s429
        %p431 = pneg %p234
        %p432 = pneg %p231
        %p433 = pneg %p260
        %p434 = pneg %p257
        %p435 = pneg %p286
        %p436 = pneg %p283
        %s437 = smul.u32 16, %s37
        %s438 = smul.u32 16, %s37
        %s439 = sld [smem:[#allocation6]]
        %p440 = scmp.eq.s32.totalorder %s37, 0
        // Predicated region
        $region61: #{tpu_custom_call.1} parent=43 // pred_check
          %p441 = pneg %p440
        $region62: #{tpu_custom_call.1} parent=43 // pred_check_branch
          %443 = sbr.rel (%p441) target = $region64
        $region63: #{tpu_custom_call.1} parent=43 // pred_region
          %v444 = vld [vmem:[#allocation7] sm:$0xf]
          %v445 = vld [vmem:[#allocation10] sm:$0xf]
          %v447 = vunpack.c.l.b16 %v445
          %v448 = vpack.c.b16 %v447, %v447
          %vm449 = vcmask 1043456
          %v452 = vsel %vm449, %v444, %v448
          %v454 = vld [vmem:[#allocation12] sm:$0xf]
          %v455 = vld [vmem:[#allocation12 + $0x4] sm:$0xf]
          %v456 = vld [vmem:[#allocation12 + $0x8] sm:$0xf]
          %v457 = vld [vmem:[#allocation12 + $0xc] sm:$0xf]
          %v458 = vld [vmem:[#allocation12 + $0x10] sm:$0xf]
          %v459 = vld [vmem:[#allocation12 + $0x14] sm:$0xf]
          %v460 = vld [vmem:[#allocation12 + $0x18] sm:$0xf]
          %v461 = vld [vmem:[#allocation12 + $0x1c] sm:$0xf]
          %v462 = vld [vmem:[#allocation12 + $0x20] sm:$0xf]
          %v463 = vld [vmem:[#allocation12 + $0x24] sm:$0xf]
          %v464 = vld [vmem:[#allocation12 + $0x28] sm:$0xf]
          %v465 = vld [vmem:[#allocation12 + $0x2c] sm:$0xf]
          %v466 = vld [vmem:[#allocation12 + $0x30] sm:$0xf]
          %v467 = vld [vmem:[#allocation12 + $0x34] sm:$0xf]
          %v468 = vld [vmem:[#allocation12 + $0x38] sm:$0xf]
          %v469 = vld [vmem:[#allocation12 + $0x3c] sm:$0xf]
          %v470 = vld [vmem:[%s4] sm:$0x1]
          %v472 = vperm.slane %v470, 0
          %v490 = vunpack.c.l.b16 %v454
          %v491 = vunpack.c.l.b16 %v455
          %v492 = vunpack.c.l.b16 %v456
          %v493 = vunpack.c.l.b16 %v457
          %v494 = vunpack.c.l.b16 %v458
          %v495 = vunpack.c.l.b16 %v459
          %v496 = vunpack.c.l.b16 %v460
          %v497 = vunpack.c.l.b16 %v461
          %v498 = vunpack.c.l.b16 %v462
          %v499 = vunpack.c.l.b16 %v463
          %v500 = vunpack.c.l.b16 %v464
          %v501 = vunpack.c.l.b16 %v465
          %v502 = vunpack.c.l.b16 %v466
          %v503 = vunpack.c.l.b16 %v467
          %v504 = vunpack.c.l.b16 %v468
          %v505 = vunpack.c.l.b16 %v469
          %v506 = vpack.c.b16 %v491, %v490
          %v507 = vpack.c.b16 %v493, %v492
          %v508 = vpack.c.b16 %v495, %v494
          %v509 = vpack.c.b16 %v497, %v496
          %v510 = vpack.c.b16 %v499, %v498
          %v511 = vpack.c.b16 %v501, %v500
          %v512 = vpack.c.b16 %v503, %v502
          %v513 = vpack.c.b16 %v505, %v504
          %522 = vmatpush.bf16.msra.mxu0 %v513
          %523 = vmatpush.bf16.msra.mxu0 %v512
          %524 = vmatpush.bf16.msra.mxu0 %v511
          %525 = vmatpush.bf16.msra.mxu0 %v510
          %526 = vmatpush.bf16.msra.mxu0 %v509
          %527 = vmatpush.bf16.msra.mxu0 %v508
          %528 = vmatpush.bf16.msra.mxu0 %v507
          %529 = vmatpush.bf16.msra.mxu0 %v506
          %530 = vmatmul.bf16.gmra.mxu0 %v452
          %v531 = vpop.f32.mrf.mxu0
          %v532 = vadd.f32 %v472, %v531
          %v533 = vpop.f32.mrf.mxu0
          %v534 = vadd.f32 %v472, %v533
          %535 = vdwg.mxu0
          %v536 = vtanh.pop %v532
          %v537 = vtanh.pop %v534
          %v538 = vmul.f32 %v536, %v536
          %v539 = vmul.f32 %v537, %v537
          %540 = vadd.xlane.f32.xlu0 %v538
          %v541 = vpop.xlane.xlu0 %540
          %542 = vadd.xlane.f32.xlu0 %v539
          %v543 = vpop.xlane.xlu0 %542
          %v544 = vmax.f32 %v541, 1e-24
          %v545 = vmax.f32 %v543, 1e-24
          %v546 = vrsqrt.pop %v544
          %v547 = vmul.f32 %v546, %v544
          %v548 = vmul.f32 %v547, %v546
          %v549 = vmul.f32 0.5, %v548
          %v550 = vsub.f32 1.5, %v549
          %v551 = vmul.f32 %v546, %v550
          %vm552 = vweird.f32 %v544
          %vm553 = vweird.f32 %v546
          %vm554 = vmor %vm552, %vm553
          %v555 = vsel %vm554, %v546, %v551
          %v556 = vrsqrt.pop %v545
          %v557 = vmul.f32 %v556, %v545
          %v558 = vmul.f32 %v557, %v556
          %v559 = vmul.f32 0.5, %v558
          %v560 = vsub.f32 1.5, %v559
          %v561 = vmul.f32 %v556, %v560
          %vm562 = vweird.f32 %v545
          %vm563 = vweird.f32 %v556
          %vm564 = vmor %vm562, %vm563
          %v565 = vsel %vm564, %v556, %v561
          %v566 = vmul.f32 %v536, %v555
          %v567 = vmul.f32 %v537, %v565
          %v568 = vstv %s439
          %v569 = vmul.f32 %v566, %v568
          %v570 = vmul.f32 %v569, %v567
          %571 = vadd.xlane.f32.xlu0 %v570
          %v572 = vpop.xlane.xlu0 %571
          %v573 = vpack.c.bf16 %v569, %v569
          %574 = vst [vmem:[#allocation2] sm:$0xf] %v573
          %vm575 = vcmask 7168
          %576 = vst.msk [vmem:[#allocation3] sm:$0xff] %vm575, %v572
          %v577 = vsub.f32 %v572, %v568
          %v578 = vmul.f32 %v577, 1.442695
          %v579 = vpow.pop %v578
          %580 = vst.msk [vmem:[#allocation4] sm:$0xff] %vm575, %v579
          %581 = vst.msk [vmem:[#allocation5] sm:$0xff] %vm575, 0.0
          %v582 = vpack.c.bf16 %v572, %v572
          %583 = vst [vmem:[#allocation16] sm:$0xf] %v582
        $region64: #{tpu_custom_call.1} parent=43 // pred_fallthru
          _
        %v584 = vld [vmem:[#allocation2] sm:$0xf]
        %v585 = vld [vmem:[%s401] sm:$0xff]
        %v586 = vld [vmem:[%s401 + $0x8] sm:$0xff]
        %v587 = vld [vmem:[%s401 + $0x10] sm:$0xff]
        %v588 = vld [vmem:[%s401 + $0x18] sm:$0xff]
        %v589 = vld [vmem:[%s401 + $0x20] sm:$0xff]
        %v590 = vld [vmem:[%s401 + $0x28] sm:$0xff]
        %v591 = vld [vmem:[%s401 + $0x30] sm:$0xff]
        %v592 = vld [vmem:[%s401 + $0x38] sm:$0xff]
        %v593 = vld [vmem:[%s401 + $0x40] sm:$0xff]
        %v594 = vld [vmem:[%s401 + $0x48] sm:$0xff]
        %v595 = vld [vmem:[%s401 + $0x50] sm:$0xff]
        %v596 = vld [vmem:[%s401 + $0x58] sm:$0xff]
        %v597 = vld [vmem:[%s401 + $0x60] sm:$0xff]
        %v598 = vld [vmem:[%s401 + $0x68] sm:$0xff]
        %v599 = vld [vmem:[%s401 + $0x70] sm:$0xff]
        %v600 = vld [vmem:[%s401 + $0x78] sm:$0xff]
        %v601 = vld [vmem:[%s401 + $0x80] sm:$0xff]
        %v602 = vld [vmem:[%s401 + $0x88] sm:$0xff]
        %v603 = vld [vmem:[%s401 + $0x90] sm:$0xff]
        %v604 = vld [vmem:[%s401 + $0x98] sm:$0xff]
        %v605 = vld [vmem:[%s401 + $0xa0] sm:$0xff]
        %v606 = vld [vmem:[%s401 + $0xa8] sm:$0xff]
        %v607 = vld [vmem:[%s401 + $0xb0] sm:$0xff]
        %v608 = vld [vmem:[%s401 + $0xb8] sm:$0xff]
        %v609 = vld [vmem:[%s401 + $0xc0] sm:$0xff]
        %v610 = vld [vmem:[%s401 + $0xc8] sm:$0xff]
        %v611 = vld [vmem:[%s401 + $0xd0] sm:$0xff]
        %v612 = vld [vmem:[%s401 + $0xd8] sm:$0xff]
        %v613 = vld [vmem:[%s401 + $0xe0] sm:$0xff]
        %v614 = vld [vmem:[%s401 + $0xe8] sm:$0xff]
        %v615 = vld [vmem:[%s401 + $0xf0] sm:$0xff]
        %v616 = vld [vmem:[%s401 + $0xf8] sm:$0xff]
        %v617 = vld [vmem:[%s401 + $0x100] sm:$0xff]
        %v618 = vld [vmem:[%s401 + $0x108] sm:$0xff]
        %v619 = vld [vmem:[%s401 + $0x110] sm:$0xff]
        %v620 = vld [vmem:[%s401 + $0x118] sm:$0xff]
        %v621 = vld [vmem:[%s401 + $0x120] sm:$0xff]
        %v622 = vld [vmem:[%s401 + $0x128] sm:$0xff]
        %v623 = vld [vmem:[%s401 + $0x130] sm:$0xff]
        %v624 = vld [vmem:[%s401 + $0x138] sm:$0xff]
        %v625 = vld [vmem:[%s401 + $0x140] sm:$0xff]
        %v626 = vld [vmem:[%s401 + $0x148] sm:$0xff]
        %v627 = vld [vmem:[%s401 + $0x150] sm:$0xff]
        %v628 = vld [vmem:[%s401 + $0x158] sm:$0xff]
        %v629 = vld [vmem:[%s401 + $0x160] sm:$0xff]
        %v630 = vld [vmem:[%s401 + $0x168] sm:$0xff]
        %v631 = vld [vmem:[%s401 + $0x170] sm:$0xff]
        %v632 = vld [vmem:[%s401 + $0x178] sm:$0xff]
        %v633 = vld [vmem:[%s401 + $0x180] sm:$0xff]
        %v634 = vld [vmem:[%s401 + $0x188] sm:$0xff]
        %v635 = vld [vmem:[%s401 + $0x190] sm:$0xff]
        %v636 = vld [vmem:[%s401 + $0x198] sm:$0xff]
        %v637 = vld [vmem:[%s401 + $0x1a0] sm:$0xff]
        %v638 = vld [vmem:[%s401 + $0x1a8] sm:$0xff]
        %v639 = vld [vmem:[%s401 + $0x1b0] sm:$0xff]
        %v640 = vld [vmem:[%s401 + $0x1b8] sm:$0xff]
        %v641 = vld [vmem:[%s401 + $0x1c0] sm:$0xff]
        %v642 = vld [vmem:[%s401 + $0x1c8] sm:$0xff]
        %v643 = vld [vmem:[%s401 + $0x1d0] sm:$0xff]
        %v644 = vld [vmem:[%s401 + $0x1d8] sm:$0xff]
        %v645 = vld [vmem:[%s401 + $0x1e0] sm:$0xff]
        %v646 = vld [vmem:[%s401 + $0x1e8] sm:$0xff]
        %v647 = vld [vmem:[%s401 + $0x1f0] sm:$0xff]
        %v648 = vld [vmem:[%s401 + $0x1f8] sm:$0xff]
        %v649 = vld [vmem:[%s401 + $0x200] sm:$0xff]
        %v650 = vld [vmem:[%s401 + $0x208] sm:$0xff]
        %v651 = vld [vmem:[%s401 + $0x210] sm:$0xff]
        %v652 = vld [vmem:[%s401 + $0x218] sm:$0xff]
        %v653 = vld [vmem:[%s401 + $0x220] sm:$0xff]
        %v654 = vld [vmem:[%s401 + $0x228] sm:$0xff]
        %v655 = vld [vmem:[%s401 + $0x230] sm:$0xff]
        %v656 = vld [vmem:[%s401 + $0x238] sm:$0xff]
        %v657 = vld [vmem:[%s401 + $0x240] sm:$0xff]
        %v658 = vld [vmem:[%s401 + $0x248] sm:$0xff]
        %v659 = vld [vmem:[%s401 + $0x250] sm:$0xff]
        %v660 = vld [vmem:[%s401 + $0x258] sm:$0xff]
        %v661 = vld [vmem:[%s401 + $0x260] sm:$0xff]
        %v662 = vld [vmem:[%s401 + $0x268] sm:$0xff]
        %v663 = vld [vmem:[%s401 + $0x270] sm:$0xff]
        %v664 = vld [vmem:[%s401 + $0x278] sm:$0xff]
        %v665 = vld [vmem:[%s401 + $0x280] sm:$0xff]
        %v666 = vld [vmem:[%s401 + $0x288] sm:$0xff]
        %v667 = vld [vmem:[%s401 + $0x290] sm:$0xff]
        %v668 = vld [vmem:[%s401 + $0x298] sm:$0xff]
        %v669 = vld [vmem:[%s401 + $0x2a0] sm:$0xff]
        %v670 = vld [vmem:[%s401 + $0x2a8] sm:$0xff]
        %v671 = vld [vmem:[%s401 + $0x2b0] sm:$0xff]
        %v672 = vld [vmem:[%s401 + $0x2b8] sm:$0xff]
        %v673 = vld [vmem:[%s401 + $0x2c0] sm:$0xff]
        %v674 = vld [vmem:[%s401 + $0x2c8] sm:$0xff]
        %v675 = vld [vmem:[%s401 + $0x2d0] sm:$0xff]
        %v676 = vld [vmem:[%s401 + $0x2d8] sm:$0xff]
        %v677 = vld [vmem:[%s401 + $0x2e0] sm:$0xff]
        %v678 = vld [vmem:[%s401 + $0x2e8] sm:$0xff]
        %v679 = vld [vmem:[%s401 + $0x2f0] sm:$0xff]
        %v680 = vld [vmem:[%s401 + $0x2f8] sm:$0xff]
        %v681 = vld [vmem:[%s401 + $0x300] sm:$0xff]
        %v682 = vld [vmem:[%s401 + $0x308] sm:$0xff]
        %v683 = vld [vmem:[%s401 + $0x310] sm:$0xff]
        %v684 = vld [vmem:[%s401 + $0x318] sm:$0xff]
        %v685 = vld [vmem:[%s401 + $0x320] sm:$0xff]
        %v686 = vld [vmem:[%s401 + $0x328] sm:$0xff]
        %v687 = vld [vmem:[%s401 + $0x330] sm:$0xff]
        %v688 = vld [vmem:[%s401 + $0x338] sm:$0xff]
        %v689 = vld [vmem:[%s401 + $0x340] sm:$0xff]
        %v690 = vld [vmem:[%s401 + $0x348] sm:$0xff]
        %v691 = vld [vmem:[%s401 + $0x350] sm:$0xff]
        %v692 = vld [vmem:[%s401 + $0x358] sm:$0xff]
        %v693 = vld [vmem:[%s401 + $0x360] sm:$0xff]
        %v694 = vld [vmem:[%s401 + $0x368] sm:$0xff]
        %v695 = vld [vmem:[%s401 + $0x370] sm:$0xff]
        %v696 = vld [vmem:[%s401 + $0x378] sm:$0xff]
        %v697 = vld [vmem:[%s401 + $0x380] sm:$0xff]
        %v698 = vld [vmem:[%s401 + $0x388] sm:$0xff]
        %v699 = vld [vmem:[%s401 + $0x390] sm:$0xff]
        %v700 = vld [vmem:[%s401 + $0x398] sm:$0xff]
        %v701 = vld [vmem:[%s401 + $0x3a0] sm:$0xff]
        %v702 = vld [vmem:[%s401 + $0x3a8] sm:$0xff]
        %v703 = vld [vmem:[%s401 + $0x3b0] sm:$0xff]
        %v704 = vld [vmem:[%s401 + $0x3b8] sm:$0xff]
        %v705 = vld [vmem:[%s401 + $0x3c0] sm:$0xff]
        %v706 = vld [vmem:[%s401 + $0x3c8] sm:$0xff]
        %v707 = vld [vmem:[%s401 + $0x3d0] sm:$0xff]
        %v708 = vld [vmem:[%s401 + $0x3d8] sm:$0xff]
        %v709 = vld [vmem:[%s401 + $0x3e0] sm:$0xff]
        %v710 = vld [vmem:[%s401 + $0x3e8] sm:$0xff]
        %v711 = vld [vmem:[%s401 + $0x3f0] sm:$0xff]
        %v712 = vld [vmem:[%s401 + $0x3f8] sm:$0xff]
        %v841 = vunpack.c.l.b16 %v585
        %v842 = vunpack.c.h.b16 %v585
        %v843 = vunpack.c.l.b16 %v586
        %v844 = vunpack.c.h.b16 %v586
        %v845 = vunpack.c.l.b16 %v587
        %v846 = vunpack.c.h.b16 %v587
        %v847 = vunpack.c.l.b16 %v588
        %v848 = vunpack.c.h.b16 %v588
        %v849 = vunpack.c.l.b16 %v589
        %v850 = vunpack.c.h.b16 %v589
        %v851 = vunpack.c.l.b16 %v590
        %v852 = vunpack.c.h.b16 %v590
        %v853 = vunpack.c.l.b16 %v591
        %v854 = vunpack.c.h.b16 %v591
        %v855 = vunpack.c.l.b16 %v592
        %v856 = vunpack.c.h.b16 %v592
        %v857 = vunpack.c.l.b16 %v593
        %v858 = vunpack.c.h.b16 %v593
        %v859 = vunpack.c.l.b16 %v594
        %v860 = vunpack.c.h.b16 %v594
        %v861 = vunpack.c.l.b16 %v595
        %v862 = vunpack.c.h.b16 %v595
        %v863 = vunpack.c.l.b16 %v596
        %v864 = vunpack.c.h.b16 %v596
        %v865 = vunpack.c.l.b16 %v597
        %v866 = vunpack.c.h.b16 %v597
        %v867 = vunpack.c.l.b16 %v598
        %v868 = vunpack.c.h.b16 %v598
        %v869 = vunpack.c.l.b16 %v599
        %v870 = vunpack.c.h.b16 %v599
        %v871 = vunpack.c.l.b16 %v600
        %v872 = vunpack.c.h.b16 %v600
        %v873 = vunpack.c.l.b16 %v601
        %v874 = vunpack.c.h.b16 %v601
        %v875 = vunpack.c.l.b16 %v602
        %v876 = vunpack.c.h.b16 %v602
        %v877 = vunpack.c.l.b16 %v603
        %v878 = vunpack.c.h.b16 %v603
        %v879 = vunpack.c.l.b16 %v604
        %v880 = vunpack.c.h.b16 %v604
        %v881 = vunpack.c.l.b16 %v605
        %v882 = vunpack.c.h.b16 %v605
        %v883 = vunpack.c.l.b16 %v606
        %v884 = vunpack.c.h.b16 %v606
        %v885 = vunpack.c.l.b16 %v607
        %v886 = vunpack.c.h.b16 %v607
        %v887 = vunpack.c.l.b16 %v608
        %v888 = vunpack.c.h.b16 %v608
        %v889 = vunpack.c.l.b16 %v609
        %v890 = vunpack.c.h.b16 %v609
        %v891 = vunpack.c.l.b16 %v610
        %v892 = vunpack.c.h.b16 %v610
        %v893 = vunpack.c.l.b16 %v611
        %v894 = vunpack.c.h.b16 %v611
        %v895 = vunpack.c.l.b16 %v612
        %v896 = vunpack.c.h.b16 %v612
        %v897 = vunpack.c.l.b16 %v613
        %v898 = vunpack.c.h.b16 %v613
        %v899 = vunpack.c.l.b16 %v614
        %v900 = vunpack.c.h.b16 %v614
        %v901 = vunpack.c.l.b16 %v615
        %v902 = vunpack.c.h.b16 %v615
        %v903 = vunpack.c.l.b16 %v616
        %v904 = vunpack.c.h.b16 %v616
        %v905 = vunpack.c.l.b16 %v617
        %v906 = vunpack.c.h.b16 %v617
        %v907 = vunpack.c.l.b16 %v618
        %v908 = vunpack.c.h.b16 %v618
        %v909 = vunpack.c.l.b16 %v619
        %v910 = vunpack.c.h.b16 %v619
        %v911 = vunpack.c.l.b16 %v620
        %v912 = vunpack.c.h.b16 %v620
        %v913 = vunpack.c.l.b16 %v621
        %v914 = vunpack.c.h.b16 %v621
        %v915 = vunpack.c.l.b16 %v622
        %v916 = vunpack.c.h.b16 %v622
        %v917 = vunpack.c.l.b16 %v623
        %v918 = vunpack.c.h.b16 %v623
        %v919 = vunpack.c.l.b16 %v624
        %v920 = vunpack.c.h.b16 %v624
        %v921 = vunpack.c.l.b16 %v625
        %v922 = vunpack.c.h.b16 %v625
        %v923 = vunpack.c.l.b16 %v626
        %v924 = vunpack.c.h.b16 %v626
        %v925 = vunpack.c.l.b16 %v627
        %v926 = vunpack.c.h.b16 %v627
        %v927 = vunpack.c.l.b16 %v628
        %v928 = vunpack.c.h.b16 %v628
        %v929 = vunpack.c.l.b16 %v629
        %v930 = vunpack.c.h.b16 %v629
        %v931 = vunpack.c.l.b16 %v630
        %v932 = vunpack.c.h.b16 %v630
        %v933 = vunpack.c.l.b16 %v631
        %v934 = vunpack.c.h.b16 %v631
        %v935 = vunpack.c.l.b16 %v632
        %v936 = vunpack.c.h.b16 %v632
        %v937 = vunpack.c.l.b16 %v633
        %v938 = vunpack.c.h.b16 %v633
        %v939 = vunpack.c.l.b16 %v634
        %v940 = vunpack.c.h.b16 %v634
        %v941 = vunpack.c.l.b16 %v635
        %v942 = vunpack.c.h.b16 %v635
        %v943 = vunpack.c.l.b16 %v636
        %v944 = vunpack.c.h.b16 %v636
        %v945 = vunpack.c.l.b16 %v637
        %v946 = vunpack.c.h.b16 %v637
        %v947 = vunpack.c.l.b16 %v638
        %v948 = vunpack.c.h.b16 %v638
        %v949 = vunpack.c.l.b16 %v639
        %v950 = vunpack.c.h.b16 %v639
        %v951 = vunpack.c.l.b16 %v640
        %v952 = vunpack.c.h.b16 %v640
        %v953 = vunpack.c.l.b16 %v641
        %v954 = vunpack.c.h.b16 %v641
        %v955 = vunpack.c.l.b16 %v642
        %v956 = vunpack.c.h.b16 %v642
        %v957 = vunpack.c.l.b16 %v643
        %v958 = vunpack.c.h.b16 %v643
        %v959 = vunpack.c.l.b16 %v644
        %v960 = vunpack.c.h.b16 %v644
        %v961 = vunpack.c.l.b16 %v645
        %v962 = vunpack.c.h.b16 %v645
        %v963 = vunpack.c.l.b16 %v646
        %v964 = vunpack.c.h.b16 %v646
        %v965 = vunpack.c.l.b16 %v647
        %v966 = vunpack.c.h.b16 %v647
        %v967 = vunpack.c.l.b16 %v648
        %v968 = vunpack.c.h.b16 %v648
        %v969 = vunpack.c.l.b16 %v649
        %v970 = vunpack.c.h.b16 %v649
        %v971 = vunpack.c.l.b16 %v650
        %v972 = vunpack.c.h.b16 %v650
        %v973 = vunpack.c.l.b16 %v651
        %v974 = vunpack.c.h.b16 %v651
        %v975 = vunpack.c.l.b16 %v652
        %v976 = vunpack.c.h.b16 %v652
        %v977 = vunpack.c.l.b16 %v653
        %v978 = vunpack.c.h.b16 %v653
        %v979 = vunpack.c.l.b16 %v654
        %v980 = vunpack.c.h.b16 %v654
        %v981 = vunpack.c.l.b16 %v655
        %v982 = vunpack.c.h.b16 %v655
        %v983 = vunpack.c.l.b16 %v656
        %v984 = vunpack.c.h.b16 %v656
        %v985 = vunpack.c.l.b16 %v657
        %v986 = vunpack.c.h.b16 %v657
        %v987 = vunpack.c.l.b16 %v658
        %v988 = vunpack.c.h.b16 %v658
        %v989 = vunpack.c.l.b16 %v659
        %v990 = vunpack.c.h.b16 %v659
        %v991 = vunpack.c.l.b16 %v660
        %v992 = vunpack.c.h.b16 %v660
        %v993 = vunpack.c.l.b16 %v661
        %v994 = vunpack.c.h.b16 %v661
        %v995 = vunpack.c.l.b16 %v662
        %v996 = vunpack.c.h.b16 %v662
        %v997 = vunpack.c.l.b16 %v663
        %v998 = vunpack.c.h.b16 %v663
        %v999 = vunpack.c.l.b16 %v664
        %v1000 = vunpack.c.h.b16 %v664
        %v1001 = vunpack.c.l.b16 %v665
        %v1002 = vunpack.c.h.b16 %v665
        %v1003 = vunpack.c.l.b16 %v666
        %v1004 = vunpack.c.h.b16 %v666
        %v1005 = vunpack.c.l.b16 %v667
        %v1006 = vunpack.c.h.b16 %v667
        %v1007 = vunpack.c.l.b16 %v668
        %v1008 = vunpack.c.h.b16 %v668
        %v1009 = vunpack.c.l.b16 %v669
        %v1010 = vunpack.c.h.b16 %v669
        %v1011 = vunpack.c.l.b16 %v670
        %v1012 = vunpack.c.h.b16 %v670
        %v1013 = vunpack.c.l.b16 %v671
        %v1014 = vunpack.c.h.b16 %v671
        %v1015 = vunpack.c.l.b16 %v672
        %v1016 = vunpack.c.h.b16 %v672
        %v1017 = vunpack.c.l.b16 %v673
        %v1018 = vunpack.c.h.b16 %v673
        %v1019 = vunpack.c.l.b16 %v674
        %v1020 = vunpack.c.h.b16 %v674
        %v1021 = vunpack.c.l.b16 %v675
        %v1022 = vunpack.c.h.b16 %v675
        %v1023 = vunpack.c.l.b16 %v676
        %v1024 = vunpack.c.h.b16 %v676
        %v1025 = vunpack.c.l.b16 %v677
        %v1026 = vunpack.c.h.b16 %v677
        %v1027 = vunpack.c.l.b16 %v678
        %v1028 = vunpack.c.h.b16 %v678
        %v1029 = vunpack.c.l.b16 %v679
        %v1030 = vunpack.c.h.b16 %v679
        %v1031 = vunpack.c.l.b16 %v680
        %v1032 = vunpack.c.h.b16 %v680
        %v1033 = vunpack.c.l.b16 %v681
        %v1034 = vunpack.c.h.b16 %v681
        %v1035 = vunpack.c.l.b16 %v682
        %v1036 = vunpack.c.h.b16 %v682
        %v1037 = vunpack.c.l.b16 %v683
        %v1038 = vunpack.c.h.b16 %v683
        %v1039 = vunpack.c.l.b16 %v684
        %v1040 = vunpack.c.h.b16 %v684
        %v1041 = vunpack.c.l.b16 %v685
        %v1042 = vunpack.c.h.b16 %v685
        %v1043 = vunpack.c.l.b16 %v686
        %v1044 = vunpack.c.h.b16 %v686
        %v1045 = vunpack.c.l.b16 %v687
        %v1046 = vunpack.c.h.b16 %v687
        %v1047 = vunpack.c.l.b16 %v688
        %v1048 = vunpack.c.h.b16 %v688
        %v1049 = vunpack.c.l.b16 %v689
        %v1050 = vunpack.c.h.b16 %v689
        %v1051 = vunpack.c.l.b16 %v690
        %v1052 = vunpack.c.h.b16 %v690
        %v1053 = vunpack.c.l.b16 %v691
        %v1054 = vunpack.c.h.b16 %v691
        %v1055 = vunpack.c.l.b16 %v692
        %v1056 = vunpack.c.h.b16 %v692
        %v1057 = vunpack.c.l.b16 %v693
        %v1058 = vunpack.c.h.b16 %v693
        %v1059 = vunpack.c.l.b16 %v694
        %v1060 = vunpack.c.h.b16 %v694
        %v1061 = vunpack.c.l.b16 %v695
        %v1062 = vunpack.c.h.b16 %v695
        %v1063 = vunpack.c.l.b16 %v696
        %v1064 = vunpack.c.h.b16 %v696
        %v1065 = vunpack.c.l.b16 %v697
        %v1066 = vunpack.c.h.b16 %v697
        %v1067 = vunpack.c.l.b16 %v698
        %v1068 = vunpack.c.h.b16 %v698
        %v1069 = vunpack.c.l.b16 %v699
        %v1070 = vunpack.c.h.b16 %v699
        %v1071 = vunpack.c.l.b16 %v700
        %v1072 = vunpack.c.h.b16 %v700
        %v1073 = vunpack.c.l.b16 %v701
        %v1074 = vunpack.c.h.b16 %v701
        %v1075 = vunpack.c.l.b16 %v702
        %v1076 = vunpack.c.h.b16 %v702
        %v1077 = vunpack.c.l.b16 %v703
        %v1078 = vunpack.c.h.b16 %v703
        %v1079 = vunpack.c.l.b16 %v704
        %v1080 = vunpack.c.h.b16 %v704
        %v1081 = vunpack.c.l.b16 %v705
        %v1082 = vunpack.c.h.b16 %v705
        %v1083 = vunpack.c.l.b16 %v706
        %v1084 = vunpack.c.h.b16 %v706
        %v1085 = vunpack.c.l.b16 %v707
        %v1086 = vunpack.c.h.b16 %v707
        %v1087 = vunpack.c.l.b16 %v708
        %v1088 = vunpack.c.h.b16 %v708
        %v1089 = vunpack.c.l.b16 %v709
        %v1090 = vunpack.c.h.b16 %v709
        %v1091 = vunpack.c.l.b16 %v710
        %v1092 = vunpack.c.h.b16 %v710
        %v1093 = vunpack.c.l.b16 %v711
        %v1094 = vunpack.c.h.b16 %v711
        %v1095 = vunpack.c.l.b16 %v712
        %v1096 = vunpack.c.h.b16 %v712
        %v1097 = vpack.c.b16 %v857, %v841
        %v1098 = vpack.c.b16 %v858, %v842
        %v1099 = vpack.c.b16 %v859, %v843
        %v1100 = vpack.c.b16 %v860, %v844
        %v1101 = vpack.c.b16 %v861, %v845
        %v1102 = vpack.c.b16 %v862, %v846
        %v1103 = vpack.c.b16 %v863, %v847
        %v1104 = vpack.c.b16 %v864, %v848
        %v1105 = vpack.c.b16 %v865, %v849
        %v1106 = vpack.c.b16 %v866, %v850
        %v1107 = vpack.c.b16 %v867, %v851
        %v1108 = vpack.c.b16 %v868, %v852
        %v1109 = vpack.c.b16 %v869, %v853
        %v1110 = vpack.c.b16 %v870, %v854
        %v1111 = vpack.c.b16 %v871, %v855
        %v1112 = vpack.c.b16 %v872, %v856
        %v1113 = vpack.c.b16 %v889, %v873
        %v1114 = vpack.c.b16 %v890, %v874
        %v1115 = vpack.c.b16 %v891, %v875
        %v1116 = vpack.c.b16 %v892, %v876
        %v1117 = vpack.c.b16 %v893, %v877
        %v1118 = vpack.c.b16 %v894, %v878
        %v1119 = vpack.c.b16 %v895, %v879
        %v1120 = vpack.c.b16 %v896, %v880
        %v1121 = vpack.c.b16 %v897, %v881
        %v1122 = vpack.c.b16 %v898, %v882
        %v1123 = vpack.c.b16 %v899, %v883
        %v1124 = vpack.c.b16 %v900, %v884
        %v1125 = vpack.c.b16 %v901, %v885
        %v1126 = vpack.c.b16 %v902, %v886
        %v1127 = vpack.c.b16 %v903, %v887
        %v1128 = vpack.c.b16 %v904, %v888
        %v1129 = vpack.c.b16 %v921, %v905
        %v1130 = vpack.c.b16 %v922, %v906
        %v1131 = vpack.c.b16 %v923, %v907
        %v1132 = vpack.c.b16 %v924, %v908
        %v1133 = vpack.c.b16 %v925, %v909
        %v1134 = vpack.c.b16 %v926, %v910
        %v1135 = vpack.c.b16 %v927, %v911
        %v1136 = vpack.c.b16 %v928, %v912
        %v1137 = vpack.c.b16 %v929, %v913
        %v1138 = vpack.c.b16 %v930, %v914
        %v1139 = vpack.c.b16 %v931, %v915
        %v1140 = vpack.c.b16 %v932, %v916
        %v1141 = vpack.c.b16 %v933, %v917
        %v1142 = vpack.c.b16 %v934, %v918
        %v1143 = vpack.c.b16 %v935, %v919
        %v1144 = vpack.c.b16 %v936, %v920
        %v1145 = vpack.c.b16 %v953, %v937
        %v1146 = vpack.c.b16 %v954, %v938
        %v1147 = vpack.c.b16 %v955, %v939
        %v1148 = vpack.c.b16 %v956, %v940
        %v1149 = vpack.c.b16 %v957, %v941
        %v1150 = vpack.c.b16 %v958, %v942
        %v1151 = vpack.c.b16 %v959, %v943
        %v1152 = vpack.c.b16 %v960, %v944
        %v1153 = vpack.c.b16 %v961, %v945
        %v1154 = vpack.c.b16 %v962, %v946
        %v1155 = vpack.c.b16 %v963, %v947
        %v1156 = vpack.c.b16 %v964, %v948
        %v1157 = vpack.c.b16 %v965, %v949
        %v1158 = vpack.c.b16 %v966, %v950
        %v1159 = vpack.c.b16 %v967, %v951
        %v1160 = vpack.c.b16 %v968, %v952
        %v1161 = vpack.c.b16 %v985, %v969
        %v1162 = vpack.c.b16 %v986, %v970
        %v1163 = vpack.c.b16 %v987, %v971
        %v1164 = vpack.c.b16 %v988, %v972
        %v1165 = vpack.c.b16 %v989, %v973
        %v1166 = vpack.c.b16 %v990, %v974
        %v1167 = vpack.c.b16 %v991, %v975
        %v1168 = vpack.c.b16 %v992, %v976
        %v1169 = vpack.c.b16 %v993, %v977
        %v1170 = vpack.c.b16 %v994, %v978
        %v1171 = vpack.c.b16 %v995, %v979
        %v1172 = vpack.c.b16 %v996, %v980
        %v1173 = vpack.c.b16 %v997, %v981
        %v1174 = vpack.c.b16 %v998, %v982
        %v1175 = vpack.c.b16 %v999, %v983
        %v1176 = vpack.c.b16 %v1000, %v984
        %v1177 = vpack.c.b16 %v1017, %v1001
        %v1178 = vpack.c.b16 %v1018, %v1002
        %v1179 = vpack.c.b16 %v1019, %v1003
        %v1180 = vpack.c.b16 %v1020, %v1004
        %v1181 = vpack.c.b16 %v1021, %v1005
        %v1182 = vpack.c.b16 %v1022, %v1006
        %v1183 = vpack.c.b16 %v1023, %v1007
        %v1184 = vpack.c.b16 %v1024, %v1008
        %v1185 = vpack.c.b16 %v1025, %v1009
        %v1186 = vpack.c.b16 %v1026, %v1010
        %v1187 = vpack.c.b16 %v1027, %v1011
        %v1188 = vpack.c.b16 %v1028, %v1012
        %v1189 = vpack.c.b16 %v1029, %v1013
        %v1190 = vpack.c.b16 %v1030, %v1014
        %v1191 = vpack.c.b16 %v1031, %v1015
        %v1192 = vpack.c.b16 %v1032, %v1016
        %v1193 = vpack.c.b16 %v1049, %v1033
        %v1194 = vpack.c.b16 %v1050, %v1034
        %v1195 = vpack.c.b16 %v1051, %v1035
        %v1196 = vpack.c.b16 %v1052, %v1036
        %v1197 = vpack.c.b16 %v1053, %v1037
        %v1198 = vpack.c.b16 %v1054, %v1038
        %v1199 = vpack.c.b16 %v1055, %v1039
        %v1200 = vpack.c.b16 %v1056, %v1040
        %v1201 = vpack.c.b16 %v1057, %v1041
        %v1202 = vpack.c.b16 %v1058, %v1042
        %v1203 = vpack.c.b16 %v1059, %v1043
        %v1204 = vpack.c.b16 %v1060, %v1044
        %v1205 = vpack.c.b16 %v1061, %v1045
        %v1206 = vpack.c.b16 %v1062, %v1046
        %v1207 = vpack.c.b16 %v1063, %v1047
        %v1208 = vpack.c.b16 %v1064, %v1048
        %v1209 = vpack.c.b16 %v1081, %v1065
        %v1210 = vpack.c.b16 %v1082, %v1066
        %v1211 = vpack.c.b16 %v1083, %v1067
        %v1212 = vpack.c.b16 %v1084, %v1068
        %v1213 = vpack.c.b16 %v1085, %v1069
        %v1214 = vpack.c.b16 %v1086, %v1070
        %v1215 = vpack.c.b16 %v1087, %v1071
        %v1216 = vpack.c.b16 %v1088, %v1072
        %v1217 = vpack.c.b16 %v1089, %v1073
        %v1218 = vpack.c.b16 %v1090, %v1074
        %v1219 = vpack.c.b16 %v1091, %v1075
        %v1220 = vpack.c.b16 %v1092, %v1076
        %v1221 = vpack.c.b16 %v1093, %v1077
        %v1222 = vpack.c.b16 %v1094, %v1078
        %v1223 = vpack.c.b16 %v1095, %v1079
        %v1224 = vpack.c.b16 %v1096, %v1080
        %1353 = vmatpush.bf16.msra.mxu0 %v1209
        %1354 = vmatpush.bf16.msra.mxu0 %v1193
        %1355 = vmatpush.bf16.msra.mxu0 %v1177
        %1356 = vmatpush.bf16.msra.mxu0 %v1161
        %1357 = vmatpush.bf16.msra.mxu0 %v1145
        %1358 = vmatpush.bf16.msra.mxu0 %v1129
        %1359 = vmatpush.bf16.msra.mxu0 %v1113
        %1360 = vmatpush.bf16.msra.mxu0 %v1097
        %1361 = vmatmul.bf16.gmra.mxu0 %v584
        %v1362 = vpop.f32.mrf.mxu0
        %v1363 = vadd.f32 0.0, %v1362
        %v1364 = vpop.f32.mrf.mxu0
        %1365 = vdwg.mxu0
        %1366 = vmatpush.bf16.msra.mxu0 %v1210
        %1367 = vmatpush.bf16.msra.mxu0 %v1194
        %1368 = vmatpush.bf16.msra.mxu0 %v1178
        %1369 = vmatpush.bf16.msra.mxu0 %v1162
        %1370 = vmatpush.bf16.msra.mxu0 %v1146
        %1371 = vmatpush.bf16.msra.mxu0 %v1130
        %1372 = vmatpush.bf16.msra.mxu0 %v1114
        %1373 = vmatpush.bf16.msra.mxu0 %v1098
        %1374 = vmatmul.bf16.gmra.mxu0 %v584
        %v1375 = vpop.f32.mrf.mxu0
        %v1376 = vadd.f32 0.0, %v1375
        %v1377 = vpop.f32.mrf.mxu0
        %1378 = vdwg.mxu0
        %1379 = vmatpush.bf16.msra.mxu0 %v1211
        %1380 = vmatpush.bf16.msra.mxu0 %v1195
        %1381 = vmatpush.bf16.msra.mxu0 %v1179
        %1382 = vmatpush.bf16.msra.mxu0 %v1163
        %1383 = vmatpush.bf16.msra.mxu0 %v1147
        %1384 = vmatpush.bf16.msra.mxu0 %v1131
        %1385 = vmatpush.bf16.msra.mxu0 %v1115
        %1386 = vmatpush.bf16.msra.mxu0 %v1099
        %1387 = vmatmul.bf16.gmra.mxu0 %v584
        %v1388 = vpop.f32.mrf.mxu0
        %v1389 = vadd.f32 0.0, %v1388
        %v1390 = vpop.f32.mrf.mxu0
        %1391 = vdwg.mxu0
        %1392 = vmatpush.bf16.msra.mxu0 %v1212
        %1393 = vmatpush.bf16.msra.mxu0 %v1196
        %1394 = vmatpush.bf16.msra.mxu0 %v1180
        %1395 = vmatpush.bf16.msra.mxu0 %v1164
        %1396 = vmatpush.bf16.msra.mxu0 %v1148
        %1397 = vmatpush.bf16.msra.mxu0 %v1132
        %1398 = vmatpush.bf16.msra.mxu0 %v1116
        %1399 = vmatpush.bf16.msra.mxu0 %v1100
        %1400 = vmatmul.bf16.gmra.mxu0 %v584
        %v1401 = vpop.f32.mrf.mxu0
        %v1402 = vadd.f32 0.0, %v1401
        %v1403 = vpop.f32.mrf.mxu0
        %1404 = vdwg.mxu0
        %1405 = vmatpush.bf16.msra.mxu0 %v1213
        %1406 = vmatpush.bf16.msra.mxu0 %v1197
        %1407 = vmatpush.bf16.msra.mxu0 %v1181
        %1408 = vmatpush.bf16.msra.mxu0 %v1165
        %1409 = vmatpush.bf16.msra.mxu0 %v1149
        %1410 = vmatpush.bf16.msra.mxu0 %v1133
        %1411 = vmatpush.bf16.msra.mxu0 %v1117
        %1412 = vmatpush.bf16.msra.mxu0 %v1101
        %1413 = vmatmul.bf16.gmra.mxu0 %v584
        %v1414 = vpop.f32.mrf.mxu0
        %v1415 = vadd.f32 0.0, %v1414
        %v1416 = vpop.f32.mrf.mxu0
        %1417 = vdwg.mxu0
        %1418 = vmatpush.bf16.msra.mxu0 %v1214
        %1419 = vmatpush.bf16.msra.mxu0 %v1198
        %1420 = vmatpush.bf16.msra.mxu0 %v1182
        %1421 = vmatpush.bf16.msra.mxu0 %v1166
        %1422 = vmatpush.bf16.msra.mxu0 %v1150
        %1423 = vmatpush.bf16.msra.mxu0 %v1134
        %1424 = vmatpush.bf16.msra.mxu0 %v1118
        %1425 = vmatpush.bf16.msra.mxu0 %v1102
        %1426 = vmatmul.bf16.gmra.mxu0 %v584
        %v1427 = vpop.f32.mrf.mxu0
        %v1428 = vadd.f32 0.0, %v1427
        %v1429 = vpop.f32.mrf.mxu0
        %1430 = vdwg.mxu0
        %1431 = vmatpush.bf16.msra.mxu0 %v1215
        %1432 = vmatpush.bf16.msra.mxu0 %v1199
        %1433 = vmatpush.bf16.msra.mxu0 %v1183
        %1434 = vmatpush.bf16.msra.mxu0 %v1167
        %1435 = vmatpush.bf16.msra.mxu0 %v1151
        %1436 = vmatpush.bf16.msra.mxu0 %v1135
        %1437 = vmatpush.bf16.msra.mxu0 %v1119
        %1438 = vmatpush.bf16.msra.mxu0 %v1103
        %1439 = vmatmul.bf16.gmra.mxu0 %v584
        %v1440 = vpop.f32.mrf.mxu0
        %v1441 = vadd.f32 0.0, %v1440
        %v1442 = vpop.f32.mrf.mxu0
        %1443 = vdwg.mxu0
        %1444 = vmatpush.bf16.msra.mxu0 %v1216
        %1445 = vmatpush.bf16.msra.mxu0 %v1200
        %1446 = vmatpush.bf16.msra.mxu0 %v1184
        %1447 = vmatpush.bf16.msra.mxu0 %v1168
        %1448 = vmatpush.bf16.msra.mxu0 %v1152
        %1449 = vmatpush.bf16.msra.mxu0 %v1136
        %1450 = vmatpush.bf16.msra.mxu0 %v1120
        %1451 = vmatpush.bf16.msra.mxu0 %v1104
        %1452 = vmatmul.bf16.gmra.mxu0 %v584
        %v1453 = vpop.f32.mrf.mxu0
        %v1454 = vadd.f32 0.0, %v1453
        %v1455 = vpop.f32.mrf.mxu0
        %1456 = vdwg.mxu0
        %1457 = vmatpush.bf16.msra.mxu0 %v1217
        %1458 = vmatpush.bf16.msra.mxu0 %v1201
        %1459 = vmatpush.bf16.msra.mxu0 %v1185
        %1460 = vmatpush.bf16.msra.mxu0 %v1169
        %1461 = vmatpush.bf16.msra.mxu0 %v1153
        %1462 = vmatpush.bf16.msra.mxu0 %v1137
        %1463 = vmatpush.bf16.msra.mxu0 %v1121
        %1464 = vmatpush.bf16.msra.mxu0 %v1105
        %1465 = vmatmul.bf16.gmra.mxu0 %v584
        %v1466 = vpop.f32.mrf.mxu0
        %v1467 = vadd.f32 0.0, %v1466
        %v1468 = vpop.f32.mrf.mxu0
        %1469 = vdwg.mxu0
        %1470 = vmatpush.bf16.msra.mxu0 %v1218
        %1471 = vmatpush.bf16.msra.mxu0 %v1202
        %1472 = vmatpush.bf16.msra.mxu0 %v1186
        %1473 = vmatpush.bf16.msra.mxu0 %v1170
        %1474 = vmatpush.bf16.msra.mxu0 %v1154
        %1475 = vmatpush.bf16.msra.mxu0 %v1138
        %1476 = vmatpush.bf16.msra.mxu0 %v1122
        %1477 = vmatpush.bf16.msra.mxu0 %v1106
        %1478 = vmatmul.bf16.gmra.mxu0 %v584
        %v1479 = vpop.f32.mrf.mxu0
        %v1480 = vadd.f32 0.0, %v1479
        %v1481 = vpop.f32.mrf.mxu0
        %1482 = vdwg.mxu0
        %1483 = vmatpush.bf16.msra.mxu0 %v1219
        %1484 = vmatpush.bf16.msra.mxu0 %v1203
        %1485 = vmatpush.bf16.msra.mxu0 %v1187
        %1486 = vmatpush.bf16.msra.mxu0 %v1171
        %1487 = vmatpush.bf16.msra.mxu0 %v1155
        %1488 = vmatpush.bf16.msra.mxu0 %v1139
        %1489 = vmatpush.bf16.msra.mxu0 %v1123
        %1490 = vmatpush.bf16.msra.mxu0 %v1107
        %1491 = vmatmul.bf16.gmra.mxu0 %v584
        %v1492 = vpop.f32.mrf.mxu0
        %v1493 = vadd.f32 0.0, %v1492
        %v1494 = vpop.f32.mrf.mxu0
        %1495 = vdwg.mxu0
        %1496 = vmatpush.bf16.msra.mxu0 %v1220
        %1497 = vmatpush.bf16.msra.mxu0 %v1204
        %1498 = vmatpush.bf16.msra.mxu0 %v1188
        %1499 = vmatpush.bf16.msra.mxu0 %v1172
        %1500 = vmatpush.bf16.msra.mxu0 %v1156
        %1501 = vmatpush.bf16.msra.mxu0 %v1140
        %1502 = vmatpush.bf16.msra.mxu0 %v1124
        %1503 = vmatpush.bf16.msra.mxu0 %v1108
        %1504 = vmatmul.bf16.gmra.mxu0 %v584
        %v1505 = vpop.f32.mrf.mxu0
        %v1506 = vadd.f32 0.0, %v1505
        %v1507 = vpop.f32.mrf.mxu0
        %1508 = vdwg.mxu0
        %1509 = vmatpush.bf16.msra.mxu0 %v1221
        %1510 = vmatpush.bf16.msra.mxu0 %v1205
        %1511 = vmatpush.bf16.msra.mxu0 %v1189
        %1512 = vmatpush.bf16.msra.mxu0 %v1173
        %1513 = vmatpush.bf16.msra.mxu0 %v1157
        %1514 = vmatpush.bf16.msra.mxu0 %v1141
        %1515 = vmatpush.bf16.msra.mxu0 %v1125
        %1516 = vmatpush.bf16.msra.mxu0 %v1109
        %1517 = vmatmul.bf16.gmra.mxu0 %v584
        %v1518 = vpop.f32.mrf.mxu0
        %v1519 = vadd.f32 0.0, %v1518
        %v1520 = vpop.f32.mrf.mxu0
        %1521 = vdwg.mxu0
        %1522 = vmatpush.bf16.msra.mxu0 %v1222
        %1523 = vmatpush.bf16.msra.mxu0 %v1206
        %1524 = vmatpush.bf16.msra.mxu0 %v1190
        %1525 = vmatpush.bf16.msra.mxu0 %v1174
        %1526 = vmatpush.bf16.msra.mxu0 %v1158
        %1527 = vmatpush.bf16.msra.mxu0 %v1142
        %1528 = vmatpush.bf16.msra.mxu0 %v1126
        %1529 = vmatpush.bf16.msra.mxu0 %v1110
        %1530 = vmatmul.bf16.gmra.mxu0 %v584
        %v1531 = vpop.f32.mrf.mxu0
        %v1532 = vadd.f32 0.0, %v1531
        %v1533 = vpop.f32.mrf.mxu0
        %1534 = vdwg.mxu0
        %1535 = vmatpush.bf16.msra.mxu0 %v1223
        %1536 = vmatpush.bf16.msra.mxu0 %v1207
        %1537 = vmatpush.bf16.msra.mxu0 %v1191
        %1538 = vmatpush.bf16.msra.mxu0 %v1175
        %1539 = vmatpush.bf16.msra.mxu0 %v1159
        %1540 = vmatpush.bf16.msra.mxu0 %v1143
        %1541 = vmatpush.bf16.msra.mxu0 %v1127
        %1542 = vmatpush.bf16.msra.mxu0 %v1111
        %1543 = vmatmul.bf16.gmra.mxu0 %v584
        %v1544 = vpop.f32.mrf.mxu0
        %v1545 = vadd.f32 0.0, %v1544
        %v1546 = vpop.f32.mrf.mxu0
        %1547 = vdwg.mxu0
        %1548 = vmatpush.bf16.msra.mxu0 %v1224
        %1549 = vmatpush.bf16.msra.mxu0 %v1208
        %1550 = vmatpush.bf16.msra.mxu0 %v1192
        %1551 = vmatpush.bf16.msra.mxu0 %v1176
        %1552 = vmatpush.bf16.msra.mxu0 %v1160
        %1553 = vmatpush.bf16.msra.mxu0 %v1144
        %1554 = vmatpush.bf16.msra.mxu0 %v1128
        %1555 = vmatpush.bf16.msra.mxu0 %v1112
        %1556 = vmatmul.bf16.gmra.mxu0 %v584
        %v1557 = vpop.f32.mrf.mxu0
        %v1558 = vadd.f32 0.0, %v1557
        %v1559 = vpop.f32.mrf.mxu0
        %1560 = vdwg.mxu0
        %v1561 = vpack.c.bf16 %v1376, %v1363
        %v1562 = vpack.c.bf16 %v1402, %v1389
        %v1563 = vpack.c.bf16 %v1428, %v1415
        %v1564 = vpack.c.bf16 %v1454, %v1441
        %v1565 = vpack.c.bf16 %v1480, %v1467
        %v1566 = vpack.c.bf16 %v1506, %v1493
        %v1567 = vpack.c.bf16 %v1532, %v1519
        %v1568 = vpack.c.bf16 %v1558, %v1545
        %1569 = vst [vmem:[%s430] sm:$0xff] %v1561
        %1570 = vst [vmem:[%s430 + $0x8] sm:$0xff] %v1562
        %1571 = vst [vmem:[%s430 + $0x10] sm:$0xff] %v1563
        %1572 = vst [vmem:[%s430 + $0x18] sm:$0xff] %v1564
        %1573 = vst [vmem:[%s430 + $0x20] sm:$0xff] %v1565
        %1574 = vst [vmem:[%s430 + $0x28] sm:$0xff] %v1566
        %1575 = vst [vmem:[%s430 + $0x30] sm:$0xff] %v1567
        %1576 = vst [vmem:[%s430 + $0x38] sm:$0xff] %v1568
        %s1577 = smul.u32 %s37, 2048
        %v1578 = vlaneseq
        %v1579 = vand.u32 %v1578, 127
        %v1580 = vadd.s32 %v1579, 128
        %v1581 = vadd.s32 %v1579, 256
        %v1582 = vadd.s32 %v1579, 384
        %v1583 = vadd.s32 %v1579, 512
        %v1584 = vadd.s32 %v1579, 640
        %v1585 = vadd.s32 %v1579, 768
        %v1586 = vadd.s32 %v1579, 896
        %v1587 = vadd.s32 %v1579, 1024
        %v1588 = vadd.s32 %v1579, 1152
        %v1589 = vadd.s32 %v1579, 1280
        %v1590 = vadd.s32 %v1579, 1408
        %v1591 = vadd.s32 %v1579, 1536
        %v1592 = vadd.s32 %v1579, 1664
        %v1593 = vadd.s32 %v1579, 1792
        %v1594 = vadd.s32 %v1579, 1920
        %v1595 = vstv %s1577
        %v1596 = vadd.s32 %v1595, %v1579
        %v1597 = vadd.s32 %v1595, %v1580
        %v1598 = vadd.s32 %v1595, %v1581
        %v1599 = vadd.s32 %v1595, %v1582
        %v1600 = vadd.s32 %v1595, %v1583
        %v1601 = vadd.s32 %v1595, %v1584
        %v1602 = vadd.s32 %v1595, %v1585
        %v1603 = vadd.s32 %v1595, %v1586
        %v1604 = vadd.s32 %v1595, %v1587
        %v1605 = vadd.s32 %v1595, %v1588
        %v1606 = vadd.s32 %v1595, %v1589
        %v1607 = vadd.s32 %v1595, %v1590
        %v1608 = vadd.s32 %v1595, %v1591
        %v1609 = vadd.s32 %v1595, %v1592
        %v1610 = vadd.s32 %v1595, %v1593
        %v1611 = vadd.s32 %v1595, %v1594
        %vm1612 = vcmp.lt.s32.totalorder %v1596, 4000
        %vm1613 = vcmp.lt.s32.totalorder %v1597, 4000
        %vm1614 = vcmp.lt.s32.totalorder %v1598, 4000
        %vm1615 = vcmp.lt.s32.totalorder %v1599, 4000
        %vm1616 = vcmp.lt.s32.totalorder %v1600, 4000
        %vm1617 = vcmp.lt.s32.totalorder %v1601, 4000
        %vm1618 = vcmp.lt.s32.totalorder %v1602, 4000
        %vm1619 = vcmp.lt.s32.totalorder %v1603, 4000
        %vm1620 = vcmp.lt.s32.totalorder %v1604, 4000
        %vm1621 = vcmp.lt.s32.totalorder %v1605, 4000
        %vm1622 = vcmp.lt.s32.totalorder %v1606, 4000
        %vm1623 = vcmp.lt.s32.totalorder %v1607, 4000
        %vm1624 = vcmp.lt.s32.totalorder %v1608, 4000
        %vm1625 = vcmp.lt.s32.totalorder %v1609, 4000
        %vm1626 = vcmp.lt.s32.totalorder %v1610, 4000
        %vm1627 = vcmp.lt.s32.totalorder %v1611, 4000
        %v1628 = vsel %vm1612, %v1363, -inf
        %v1629 = vsel %vm1613, %v1376, -inf
        %v1630 = vsel %vm1614, %v1389, -inf
        %v1631 = vsel %vm1615, %v1402, -inf
        %v1632 = vsel %vm1616, %v1415, -inf
        %v1633 = vsel %vm1617, %v1428, -inf
        %v1634 = vsel %vm1618, %v1441, -inf
        %v1635 = vsel %vm1619, %v1454, -inf
        %v1636 = vsel %vm1620, %v1467, -inf
        %v1637 = vsel %vm1621, %v1480, -inf
        %v1638 = vsel %vm1622, %v1493, -inf
        %v1639 = vsel %vm1623, %v1506, -inf
        %v1640 = vsel %vm1624, %v1519, -inf
        %v1641 = vsel %vm1625, %v1532, -inf
        %v1642 = vsel %vm1626, %v1545, -inf
        %v1643 = vsel %vm1627, %v1558, -inf
        %v1644 = vld [vmem:[#allocation4] sm:$0xff]
        %v1645 = vstv %s439
        %v1646 = vsub.f32 %v1628, %v1645
        %v1647 = vsub.f32 %v1629, %v1645
        %v1648 = vsub.f32 %v1630, %v1645
        %v1649 = vsub.f32 %v1631, %v1645
        %v1650 = vsub.f32 %v1632, %v1645
        %v1651 = vsub.f32 %v1633, %v1645
        %v1652 = vsub.f32 %v1634, %v1645
        %v1653 = vsub.f32 %v1635, %v1645
        %v1654 = vsub.f32 %v1636, %v1645
        %v1655 = vsub.f32 %v1637, %v1645
        %v1656 = vsub.f32 %v1638, %v1645
        %v1657 = vsub.f32 %v1639, %v1645
        %v1658 = vsub.f32 %v1640, %v1645
        %v1659 = vsub.f32 %v1641, %v1645
        %v1660 = vsub.f32 %v1642, %v1645
        %v1661 = vsub.f32 %v1643, %v1645
        %v1662 = vmul.f32 %v1646, 1.442695
        %v1663 = vpow.pop %v1662
        %v1664 = vmul.f32 %v1647, 1.442695
        %v1665 = vpow.pop %v1664
        %v1666 = vmul.f32 %v1648, 1.442695
        %v1667 = vpow.pop %v1666
        %v1668 = vmul.f32 %v1649, 1.442695
        %v1669 = vpow.pop %v1668
        %v1670 = vmul.f32 %v1650, 1.442695
        %v1671 = vpow.pop %v1670
        %v1672 = vmul.f32 %v1651, 1.442695
        %v1673 = vpow.pop %v1672
        %v1674 = vmul.f32 %v1652, 1.442695
        %v1675 = vpow.pop %v1674
        %v1676 = vmul.f32 %v1653, 1.442695
        %v1677 = vpow.pop %v1676
        %v1678 = vmul.f32 %v1654, 1.442695
        %v1679 = vpow.pop %v1678
        %v1680 = vmul.f32 %v1655, 1.442695
        %v1681 = vpow.pop %v1680
        %v1682 = vmul.f32 %v1656, 1.442695
        %v1683 = vpow.pop %v1682
        %v1684 = vmul.f32 %v1657, 1.442695
        %v1685 = vpow.pop %v1684
        %v1686 = vmul.f32 %v1658, 1.442695
        %v1687 = vpow.pop %v1686
        %v1688 = vmul.f32 %v1659, 1.442695
        %v1689 = vpow.pop %v1688
        %v1690 = vmul.f32 %v1660, 1.442695
        %v1691 = vpow.pop %v1690
        %v1692 = vmul.f32 %v1661, 1.442695
        %v1693 = vpow.pop %v1692
        %v1694 = vadd.f32 %v1663, %v1665
        %v1695 = vadd.f32 %v1694, %v1667
        %v1696 = vadd.f32 %v1695, %v1669
        %v1697 = vadd.f32 %v1696, %v1671
        %v1698 = vadd.f32 %v1697, %v1673
        %v1699 = vadd.f32 %v1698, %v1675
        %v1700 = vadd.f32 %v1699, %v1677
        %v1701 = vadd.f32 %v1700, %v1679
        %v1702 = vadd.f32 %v1701, %v1681
        %v1703 = vadd.f32 %v1702, %v1683
        %v1704 = vadd.f32 %v1703, %v1685
        %v1705 = vadd.f32 %v1704, %v1687
        %v1706 = vadd.f32 %v1705, %v1689
        %v1707 = vadd.f32 %v1706, %v1691
        %v1708 = vadd.f32 %v1707, %v1693
        %1709 = vadd.xlane.f32.xlu0 %v1708
        %v1710 = vpop.xlane.xlu0 %1709
        %v1711 = vadd.f32 %v1644, %v1710
        %vm1712 = vcmask 7168
        %1713 = vst.msk [vmem:[#allocation4] sm:$0xff] %vm1712, %v1711
        %v1714 = vld [vmem:[#allocation5] sm:$0xff]
        %v1715 = vld [vmem:[#allocation3] sm:$0xff]
        %1717 = vset.pattern.permute.xlu0 0
        %1718 = vperm.xlu0 %1717, %v1715
        %v1719 = vpop.permute.xlu0 %1718
        %vm1721 = vcmp.gt.f32.partialorder %v1628, %v1719
        %vm1722 = vcmp.gt.f32.partialorder %v1629, %v1719
        %vm1723 = vcmp.gt.f32.partialorder %v1630, %v1719
        %vm1724 = vcmp.gt.f32.partialorder %v1631, %v1719
        %vm1725 = vcmp.gt.f32.partialorder %v1632, %v1719
        %vm1726 = vcmp.gt.f32.partialorder %v1633, %v1719
        %vm1727 = vcmp.gt.f32.partialorder %v1634, %v1719
        %vm1728 = vcmp.gt.f32.partialorder %v1635, %v1719
        %vm1729 = vcmp.gt.f32.partialorder %v1636, %v1719
        %vm1730 = vcmp.gt.f32.partialorder %v1637, %v1719
        %vm1731 = vcmp.gt.f32.partialorder %v1638, %v1719
        %vm1732 = vcmp.gt.f32.partialorder %v1639, %v1719
        %vm1733 = vcmp.gt.f32.partialorder %v1640, %v1719
        %vm1734 = vcmp.gt.f32.partialorder %v1641, %v1719
        %vm1735 = vcmp.gt.f32.partialorder %v1642, %v1719
        %vm1736 = vcmp.gt.f32.partialorder %v1643, %v1719
        %v1737 = vsel %vm1721, 1, 0
        %v1738 = vsel %vm1722, 1, 0
        %v1739 = vsel %vm1723, 1, 0
        %v1740 = vsel %vm1724, 1, 0
        %v1741 = vsel %vm1725, 1, 0
        %v1742 = vsel %vm1726, 1, 0
        %v1743 = vsel %vm1727, 1, 0
        %v1744 = vsel %vm1728, 1, 0
        %v1745 = vsel %vm1729, 1, 0
        %v1746 = vsel %vm1730, 1, 0
        %v1747 = vsel %vm1731, 1, 0
        %v1748 = vsel %vm1732, 1, 0
        %v1749 = vsel %vm1733, 1, 0
        %v1750 = vsel %vm1734, 1, 0
        %v1751 = vsel %vm1735, 1, 0
        %v1752 = vsel %vm1736, 1, 0
        %v1753 = vcvt.s32.f32 %v1737
        %v1754 = vcvt.s32.f32 %v1738
        %v1755 = vcvt.s32.f32 %v1739
        %v1756 = vcvt.s32.f32 %v1740
        %v1757 = vcvt.s32.f32 %v1741
        %v1758 = vcvt.s32.f32 %v1742
        %v1759 = vcvt.s32.f32 %v1743
        %v1760 = vcvt.s32.f32 %v1744
        %v1761 = vcvt.s32.f32 %v1745
        %v1762 = vcvt.s32.f32 %v1746
        %v1763 = vcvt.s32.f32 %v1747
        %v1764 = vcvt.s32.f32 %v1748
        %v1765 = vcvt.s32.f32 %v1749
        %v1766 = vcvt.s32.f32 %v1750
        %v1767 = vcvt.s32.f32 %v1751
        %v1768 = vcvt.s32.f32 %v1752
        %v1769 = vadd.f32 %v1753, %v1754
        %v1770 = vadd.f32 %v1769, %v1755
        %v1771 = vadd.f32 %v1770, %v1756
        %v1772 = vadd.f32 %v1771, %v1757
        %v1773 = vadd.f32 %v1772, %v1758
        %v1774 = vadd.f32 %v1773, %v1759
        %v1775 = vadd.f32 %v1774, %v1760
        %v1776 = vadd.f32 %v1775, %v1761
        %v1777 = vadd.f32 %v1776, %v1762
        %v1778 = vadd.f32 %v1777, %v1763
        %v1779 = vadd.f32 %v1778, %v1764
        %v1780 = vadd.f32 %v1779, %v1765
        %v1781 = vadd.f32 %v1780, %v1766
        %v1782 = vadd.f32 %v1781, %v1767
        %v1783 = vadd.f32 %v1782, %v1768
        %1784 = vadd.xlane.f32.xlu0 %v1783
        %v1785 = vpop.xlane.xlu0 %1784
        %v1786 = vadd.f32 %v1714, %v1785
        %1787 = vst.msk [vmem:[#allocation5] sm:$0xff] %vm1712, %v1786
        %p1788 = scmp.eq.s32.totalorder %s37, 1
        // Predicated region
        $region65: #{tpu_custom_call.1} parent=43 // pred_check
          %p1789 = pneg %p1788
        $region66: #{tpu_custom_call.1} parent=43 // pred_check_branch
          %1791 = sbr.rel (%p1789) target = $region68
        $region67: #{tpu_custom_call.1} parent=43 // pred_region
          %v1792 = vld [vmem:[#allocation4] sm:$0xff]
          %v1793 = vlog2.pop %v1792
          %v1794 = vmul.f32 %v1793, 0.6931472
          %v1795 = vadd.f32 %v1645, %v1794
          %v1796 = vld [vmem:[#allocation3] sm:$0xff]
          %v1797 = vsub.f32 %v1795, %v1796
          %1799 = vset.pattern.permute.xlu0 0
          %1800 = vperm.xlu0 %1799, %v1797
          %v1801 = vpop.permute.xlu0 %1800
          %1803 = vst [vmem:[#allocation18] sm:$0xff] %v1801
          %v1804 = vld [vmem:[#allocation5] sm:$0xff]
          %1806 = vset.pattern.permute.xlu0 0
          %1807 = vperm.xlu0 %1806, %v1804
          %v1808 = vpop.permute.xlu0 %1807
          %1810 = vst [vmem:[#allocation19] sm:$0xff] %v1808
        $region68: #{tpu_custom_call.1} parent=43 // pred_fallthru
          _
        %s1811 = sand.u32 %s195, 1
        %s1812 = scalar_lea.sflag [#allocation9], %s1811
        %s1813 = sand.u32 %s195, 1
        %s1814 = smul.addr %s1813, 64
        %s1815 = scalar_lea.vmem [#allocation15], %s1814
        // Predicated region
        $region69: #{tpu_custom_call.1} parent=43 // pred_check
          %p1816 = pneg %p205
        $region70: #{tpu_custom_call.1} parent=43 // pred_check_branch
          %1818 = sbr.rel (%p1816) target = $region72
        $region71: #{tpu_custom_call.1} parent=43 // pred_region
          %s1819 = smul.u32 16, %s37
          %1821 = vsyncadd %s1812, 0
          %s1822 = smul.addr %s36, 32
          %s1823 = sadd.s32 %s1819, %s1822
          %s1824 = smul.addr %s1823, 4
          %s1825 = scalar_lea.hbm %s6, %s1824
          %s1827 = sshll.u32 %s1815, 4
          %s1828 = int_to_ptr.vmem [resolvable:$true] %s1827
          %s1829 = sshll.u32 %s1825, 4
          %s1830 = int_to_ptr.hbm [resolvable:$true] %s1829
          %1832 = dma.vmem_to_hbm [thread:$0]  %s1828, 1024, %s1830, %s1812
        $region72: #{tpu_custom_call.1} parent=43 // pred_fallthru
          _
        // Predicated region
        $region73: #{tpu_custom_call.1} parent=43 // pred_check
          %p1833 = pneg %p231
        $region74: #{tpu_custom_call.1} parent=43 // pred_check_branch
          %1835 = sbr.rel (%p1833) target = $region76
        $region75: #{tpu_custom_call.1} parent=43 // pred_region
          %1837 = vsyncadd [#allocation17], 0
          %s1838 = smul.addr %s36, 4
          %s1839 = scalar_lea.hbm %s7, %s1838
          %s1841 = sshll.u32 [#allocation16], 4
          %s1842 = int_to_ptr.vmem [resolvable:$true] %s1841
          %s1843 = sshll.u32 %s1839, 4
          %s1844 = int_to_ptr.hbm [resolvable:$true] %s1843
          %1846 = dma.vmem_to_hbm [thread:$0]  %s1842, 64, %s1844, [#allocation17]
        $region76: #{tpu_custom_call.1} parent=43 // pred_fallthru
          _
        // Predicated region
        $region77: #{tpu_custom_call.1} parent=43 // pred_check
          %p1847 = pneg %p257
        $region78: #{tpu_custom_call.1} parent=43 // pred_check_branch
          %1849 = sbr.rel (%p1847) target = $region80
        $region79: #{tpu_custom_call.1} parent=43 // pred_region
          %1851 = vsyncadd [#allocation17], 0
          %s1852 = smul.addr %s36, 8
          %s1853 = scalar_lea.hbm %s8, %s1852
          %s1855 = sshll.u32 [#allocation18], 4
          %s1856 = int_to_ptr.vmem [resolvable:$true] %s1855
          %s1857 = sshll.u32 %s1853, 4
          %s1858 = int_to_ptr.hbm [resolvable:$true] %s1857
          %1860 = dma.vmem_to_hbm [thread:$0]  %s1856, 128, %s1858, [#allocation17]
        $region80: #{tpu_custom_call.1} parent=43 // pred_fallthru
          _
        // Predicated region
        $region81: #{tpu_custom_call.1} parent=43 // pred_check
          %p1861 = pneg %p283
        $region82: #{tpu_custom_call.1} parent=43 // pred_check_branch
          %1863 = sbr.rel (%p1861) target = $region84
        $region83: #{tpu_custom_call.1} parent=43 // pred_region
          %1865 = vsyncadd [#allocation20], 0
          %s1866 = smul.addr %s36, 8
          %s1867 = scalar_lea.hbm %s9, %s1866
          %s1869 = sshll.u32 [#allocation19], 4
          %s1870 = int_to_ptr.vmem [resolvable:$true] %s1869
          %s1871 = sshll.u32 %s1867, 4
          %s1872 = int_to_ptr.hbm [resolvable:$true] %s1871
          %1874 = dma.vmem_to_hbm [thread:$0]  %s1870, 128, %s1872, [#allocation20]
        $region84: #{tpu_custom_call.1} parent=43 // pred_fallthru
          _
        // Predicated region
        $region85: #{tpu_custom_call.1} parent=43 // pred_check
          %p1875 = pneg %p231
        $region86: #{tpu_custom_call.1} parent=43 // pred_check_branch
          %1877 = sbr.rel (%p1875) target = $region88
        $region87: #{tpu_custom_call.1} parent=43 // pred_region
          %1879 = dma.done [#allocation17], 64
        $region88: #{tpu_custom_call.1} parent=43 // pred_fallthru
          _
        // Predicated region
        $region89: #{tpu_custom_call.1} parent=43 // pred_check
          %p1880 = pneg %p257
        $region90: #{tpu_custom_call.1} parent=43 // pred_check_branch
          %1882 = sbr.rel (%p1880) target = $region92
        $region91: #{tpu_custom_call.1} parent=43 // pred_region
          %1884 = dma.done [#allocation17], 128
        $region92: #{tpu_custom_call.1} parent=43 // pred_fallthru
          _
        // Predicated region
        $region93: #{tpu_custom_call.1} parent=43 // pred_check
          %p1885 = pneg %p283
        $region94: #{tpu_custom_call.1} parent=43 // pred_check_branch
          %1887 = sbr.rel (%p1885) target = $region96
        $region95: #{tpu_custom_call.1} parent=43 // pred_region
          %1889 = dma.done [#allocation20], 128
        $region96: #{tpu_custom_call.1} parent=43 // pred_fallthru
          _
      $region44: #{tpu_custom_call.1} parent=5 // pred_fallthru
        _
      %p1890 = scmp.le.s32.totalorder 2, %s27
      // Predicated region
      $region97: #{tpu_custom_call.1} parent=5 // pred_check
        %p1891 = pneg %p1890
      $region98: #{tpu_custom_call.1} parent=5 // pred_check_branch
        %1893 = sbr.rel (%p1891) target = $region100
      $region99: #{tpu_custom_call.1} parent=5 // pred_region
        %s1894 = ssub.s32 %s27, 2
        // Predicated region
        $region101: #{tpu_custom_call.1} parent=99 // pred_check
          %p1895 = pneg %p211
        $region102: #{tpu_custom_call.1} parent=99 // pred_check_branch
          %1897 = sbr.rel (%p1895) target = $region104
        $region103: #{tpu_custom_call.1} parent=99 // pred_region
          %s1898 = sand.u32 %s196, 1
          %s1899 = scalar_lea.sflag [#allocation9], %s1898
          %s1900 = sand.u32 %s196, 1
          %s1901 = smul.addr %s1900, 64
          %s1902 = scalar_lea.vmem [#allocation15], %s1901
          %1904 = dma.done %s1899, 1024
        $region104: #{tpu_custom_call.1} parent=99 // pred_fallthru
          _
      $region100: #{tpu_custom_call.1} parent=5 // pred_fallthru
        _
    $region6: #{tpu_custom_call.1} parent=1 // loop_footer
      %s31 = sadd.s32 1, %s27
    $region7: #{tpu_custom_call.1} parent=1 // loop_footer_branch
      %26 = sbr.rel target = $region3
    $region8: #{tpu_custom_call.1} parent=1 // loop_exit
      _
    %1905 = vsyncpa [#allocation8], 1
    %s1906 = scalar_lea.sflag [#allocation8], 1
    %1907 = vsyncpa %s1906, 1
    %1908 = vsyncpa [#allocation11], 1
    %1909 = vsyncpa [#allocation14], 1
    %s1910 = scalar_lea.sflag [#allocation14], 1
    %1911 = vsyncpa %s1910, 1
    %1912 = vsyncpa [#allocation9], 1
    %s1913 = scalar_lea.sflag [#allocation9], 1
    %1914 = vsyncpa %s1913, 1
    %1915 = vsyncpa [#allocation17], 1
    %1916 = vsyncpa [#allocation20], 1

</llo_original>
